<compile_context>
chip_gen: v7x
topology: tpu7x:2x2x1
jax: 0.10.0
libtpu: 0.0.40
codegen_flags: <defaults>
</compile_context>

<pallas_src>
import functools

import jax
import jax.numpy as jnp
from jax.experimental import pallas as pl
from jax.experimental.pallas import tpu as pltpu


def basic_block_kernel(xpad_ref, w1_ref, s1_ref, b1_ref,
                       w2_ref, s2_ref, b2_ref, out_ref):
    """One grid step == one (image, row-strip).

    xpad_ref : (1, H+4, W+2, Cin)  zero-padded input (NHWC), f32
               (2-row halo for the two stacked 3x3 convs, 1-col halo)
    w1_ref   : (9*Cin, Cmid)       conv1 weights, tap-major (kh*3+kw)*Cin + c, bf16
    s1/b1    : (1, Cmid)           folded BN1 scale / bias, f32
    w2_ref   : (9*Cmid, Cout)      conv2 weights, bf16
    s2/b2    : (1, Cout)           folded BN2 scale / bias, f32
    out_ref  : (1, TH, W, Cout)    output row strip, f32
    """
    TH = out_ref.shape[1]
    W = out_ref.shape[2]
    H = xpad_ref.shape[1] - 4
    Cin = xpad_ref.shape[3]
    Cmid = w1_ref.shape[1]
    Cout = w2_ref.shape[1]

    # Strip start row (in un-padded coordinates).
    hs = pl.multiple_of(pl.program_id(1) * TH, TH)

    # Padded input rows needed for this strip: conv2 rows [hs, hs+TH) need
    # conv1 rows [hs-1, hs+TH+1) need input rows [hs-2, hs+TH+2)
    # -> padded rows [hs, hs+TH+4).
    xs = xpad_ref[0, pl.ds(hs, TH + 4), :, :]            # (TH+4, W+2, Cin) f32

    # ---- conv1 (3x3, pad=1, stride=1): single im2col matmul, K = 9*Cin ----
    taps1 = [xs[kh:kh + TH + 2, kw:kw + W, :]
             for kh in range(3) for kw in range(3)]      # 9 x (TH+2, W, Cin)
    p1 = jnp.concatenate(taps1, axis=-1)                 # (TH+2, W, 9*Cin)
    p1 = p1.reshape((TH + 2) * W, 9 * Cin).astype(jnp.bfloat16)
    acc1 = jnp.dot(p1, w1_ref[...],
                   preferred_element_type=jnp.float32)   # ((TH+2)*W, Cmid) f32

    # ---- BN1 (folded) + ReLU (f32) ----
    h1 = jnp.maximum(acc1 * s1_ref[...] + b1_ref[...], 0.0)
    h1 = h1.reshape(TH + 2, W, Cmid)

    # conv1 rows that fall outside [0, H) must read as zero padding for conv2.
    rows = jax.lax.broadcasted_iota(jnp.int32, (TH + 2, W, Cmid), 0) + (hs - 1)
    h1 = jnp.where((rows >= 0) & (rows < H), h1, 0.0)

    # Zero halo columns for conv2 (no full-buffer zero sweep, no scratch).
    zcol = jnp.zeros((TH + 2, 1, Cmid), jnp.float32)
    hpad = jnp.concatenate([zcol, h1, zcol], axis=1)     # (TH+2, W+2, Cmid)

    # ---- conv2 (3x3, pad=1, stride=1): single im2col matmul, K = 9*Cmid ----
    taps2 = [hpad[kh:kh + TH, kw:kw + W, :]
             for kh in range(3) for kw in range(3)]      # 9 x (TH, W, Cmid)
    p2 = jnp.concatenate(taps2, axis=-1)                 # (TH, W, 9*Cmid)
    p2 = p2.reshape(TH * W, 9 * Cmid).astype(jnp.bfloat16)
    acc2 = jnp.dot(p2, w2_ref[...],
                   preferred_element_type=jnp.float32)   # (TH*W, Cout) f32

    # ---- BN2 (folded) + residual add + ReLU (f32) ----
    # Residual sliced from the already-resident padded input (no second DMA).
    res = xs[2:2 + TH, 1:1 + W, :].reshape(TH * W, Cin)
    out = jnp.maximum(acc2 * s2_ref[...] + b2_ref[...] + res, 0.0)
    out_ref[0] = out.reshape(TH, W, Cout)


def fold_bn(gamma, beta, running_mean, running_var, eps=1e-5):
    scale = gamma / jnp.sqrt(running_var + eps)
    bias = beta - running_mean * scale
    return scale, bias


@jax.jit
def basic_block_forward(x_nchw, params):
    """x_nchw: (N, Cin, H, W) float32 -> (N, Cout, H, W) float32."""
    w1, g1, be1, rm1, rv1, w2, g2, be2, rm2, rv2 = params
    N, Cin, H, W = x_nchw.shape
    Cmid = w1.shape[0]
    Cout = w2.shape[0]
    assert Cin == Cout, "identity residual requires inplanes == planes"

    # Row-strip size: bounds accumulator / vreg footprint at real ResNet sizes
    # and gives the (parallel) grid enough steps for v7x's 2 TensorCores.
    TH = 8 if H % 8 == 0 else H

    # NCHW -> NHWC, pad H by 2 (fused two-conv halo) and W by 1.
    x = jnp.transpose(x_nchw, (0, 2, 3, 1)).astype(jnp.float32)      # (N,H,W,Cin)
    xpad = jnp.pad(x, ((0, 0), (2, 2), (1, 1), (0, 0)))              # (N,H+4,W+2,Cin)
    # TODO(synk): with spatial tiling in place the wrapper pad could be replaced
    # by in-kernel halo handling to save one HBM round-trip of the activation.

    # OIHW -> (9*I, O), tap-major; pre-cast to bf16 for the MXU.
    w1_t = jnp.transpose(w1, (2, 3, 1, 0)).reshape(9 * Cin, Cmid).astype(jnp.bfloat16)
    w2_t = jnp.transpose(w2, (2, 3, 1, 0)).reshape(9 * Cmid, Cout).astype(jnp.bfloat16)

    s1, b1 = fold_bn(g1, be1, rm1, rv1)
    s2, b2 = fold_bn(g2, be2, rm2, rv2)
    s1 = s1.reshape(1, Cmid); b1 = b1.reshape(1, Cmid)
    s2 = s2.reshape(1, Cout); b2 = b2.reshape(1, Cout)

    out_nhwc = pl.pallas_call(
        basic_block_kernel,
        out_shape=jax.ShapeDtypeStruct((N, H, W, Cout), jnp.float32),
        grid_spec=pltpu.PrefetchScalarGridSpec(
            num_scalar_prefetch=0,
            grid=(N, H // TH),
            in_specs=[
                # full padded image resident per image; strip axis re-uses it
                pl.BlockSpec((1, H + 4, W + 2, Cin), lambda n, h: (n, 0, 0, 0)),
                pl.BlockSpec((9 * Cin, Cmid),        lambda n, h: (0, 0)),
                pl.BlockSpec((1, Cmid),              lambda n, h: (0, 0)),
                pl.BlockSpec((1, Cmid),              lambda n, h: (0, 0)),
                pl.BlockSpec((9 * Cmid, Cout),       lambda n, h: (0, 0)),
                pl.BlockSpec((1, Cout),              lambda n, h: (0, 0)),
                pl.BlockSpec((1, Cout),              lambda n, h: (0, 0)),
            ],
            out_specs=pl.BlockSpec((1, TH, W, Cout), lambda n, h: (n, h, 0, 0)),
        ),
        compiler_params=pltpu.CompilerParams(
            dimension_semantics=("parallel", "parallel"),
            vmem_limit_bytes=32 * 1024 * 1024),
    )(xpad, w1_t, s1, b1, w2_t, s2, b2)

    # NHWC -> NCHW
    return jnp.transpose(out_nhwc, (0, 3, 1, 2))


def reference_forward(x_nchw, params):
    """Pure-JAX f32 reference matching PyTorch eval-mode BasicBlock."""
    w1, g1, be1, rm1, rv1, w2, g2, be2, rm2, rv2 = params

    def conv3x3(x, w):
        return jax.lax.conv_general_dilated(
            x, w, window_strides=(1, 1), padding=((1, 1), (1, 1)),
            dimension_numbers=("NCHW", "OIHW", "NCHW"))

    def bn(x, g, b, rm, rv, eps=1e-5):
        s = g / jnp.sqrt(rv + eps)
        return x * s[None, :, None, None] + (b - rm * s)[None, :, None, None]

    out = jnp.maximum(bn(conv3x3(x_nchw, w1), g1, be1, rm1, rv1), 0.0)
    out = bn(conv3x3(out, w2), g2, be2, rm2, rv2)
    return jnp.maximum(out + x_nchw, 0.0)


if __name__ == "__main__":
    # BasicBlock(inplanes=4, planes=4, stride=1, downsample=None)
    N, C, H, W = 2, 4, 16, 16
    inplanes, planes = C, C

    key = jax.random.PRNGKey(0)
    ks = jax.random.split(key, 9)

    x = jax.random.normal(ks[0], (N, C, H, W), jnp.float32)

    w1 = 0.1 * jax.random.normal(ks[1], (planes, inplanes, 3, 3), jnp.float32)
    g1 = 1.0 + 0.1 * jax.random.normal(ks[2], (planes,), jnp.float32)
    be1 = 0.1 * jax.random.normal(ks[3], (planes,), jnp.float32)
    rm1 = 0.1 * jax.random.normal(ks[4], (planes,), jnp.float32)
    rv1 = jnp.abs(1.0 + 0.1 * jax.random.normal(ks[5], (planes,), jnp.float32))

    w2 = 0.1 * jax.random.normal(ks[6], (planes, planes, 3, 3), jnp.float32)
    g2 = 1.0 + 0.1 * jax.random.normal(ks[7], (planes,), jnp.float32)
    be2 = 0.1 * jax.random.normal(ks[8], (planes,), jnp.float32)
    rm2 = jnp.zeros((planes,), jnp.float32)
    rv2 = jnp.ones((planes,), jnp.float32)

    params = (w1, g1, be1, rm1, rv1, w2, g2, be2, rm2, rv2)

    out = basic_block_forward(x, params)
    out = jax.block_until_ready(out)

    ref = jax.block_until_ready(reference_forward(x, params))
    assert out.shape == (N, C, H, W)
    # bf16 MXU operands (f32 accumulate) vs. the f32 reference: tolerance
    # loosened per the perf review (~1e-2-scale differences expected).
    assert jnp.allclose(out, ref, atol=5e-2, rtol=5e-2), (
        float(jnp.max(jnp.abs(out - ref))))

    print("KERNEL_OK")
</pallas_src>

<mosaic_0001>
module attributes {stable_mosaic.version = 11 : i64} {
  func.func @basic_block_kernel(%arg0: i32, %arg1: i32, %arg2: memref<1x20x18x4xf32, #tpu.memory_space<vmem>>, %arg3: memref<36x4xbf16, #tpu.memory_space<vmem>>, %arg4: memref<1x4xf32, #tpu.memory_space<vmem>>, %arg5: memref<1x4xf32, #tpu.memory_space<vmem>>, %arg6: memref<36x4xbf16, #tpu.memory_space<vmem>>, %arg7: memref<1x4xf32, #tpu.memory_space<vmem>>, %arg8: memref<1x4xf32, #tpu.memory_space<vmem>>, %arg9: memref<1x8x16x4xf32, #tpu.memory_space<vmem>>) attributes {dimension_semantics = [#tpu.dimension_semantics<parallel>, #tpu.dimension_semantics<parallel>], iteration_bounds = array<i64: 2, 2>, scalar_prefetch = 0 : i64, scratch_operands = 0 : i64, tpu.core_type = #tpu.core_type<tc>, window_params = [{transform_indices = @transform_0, window_bounds = array<i64: 1, 20, 18, 4>}, {pipeline_mode = #tpu.pipeline_mode<synchronous>, transform_indices = @transform_1, window_bounds = array<i64: 36, 4>}, {pipeline_mode = #tpu.pipeline_mode<synchronous>, transform_indices = @transform_2, window_bounds = array<i64: 1, 4>}, {pipeline_mode = #tpu.pipeline_mode<synchronous>, transform_indices = @transform_3, window_bounds = array<i64: 1, 4>}, {pipeline_mode = #tpu.pipeline_mode<synchronous>, transform_indices = @transform_4, window_bounds = array<i64: 36, 4>}, {pipeline_mode = #tpu.pipeline_mode<synchronous>, transform_indices = @transform_5, window_bounds = array<i64: 1, 4>}, {pipeline_mode = #tpu.pipeline_mode<synchronous>, transform_indices = @transform_6, window_bounds = array<i64: 1, 4>}, {transform_indices = @transform_7, window_bounds = array<i64: 1, 8, 16, 4>}]} {
    %c8_i32 = arith.constant 8 : i32
    %0 = arith.muli %arg1, %c8_i32 : i32
    %1 = tpu.assume_multiple %0, 8 : i32
    %c0 = arith.constant 0 : index
    %2 = arith.index_cast %1 : i32 to index
    %c0_0 = arith.constant 0 : index
    %c0_1 = arith.constant 0 : index
    %3 = vector.load %arg2[%c0, %2, %c0_0, %c0_1] : memref<1x20x18x4xf32, #tpu.memory_space<vmem>>, vector<1x12x18x4xf32>
    %4 = vector.shape_cast %3 : vector<1x12x18x4xf32> to vector<12x18x4xf32>
    %5 = vector.extract_strided_slice %4 {offsets = [0, 0, 0], sizes = [10, 16, 4], strides = [1, 1, 1]} : vector<12x18x4xf32> to vector<10x16x4xf32>
    %6 = vector.extract_strided_slice %4 {offsets = [0, 1, 0], sizes = [10, 16, 4], strides = [1, 1, 1]} : vector<12x18x4xf32> to vector<10x16x4xf32>
    %7 = vector.extract_strided_slice %4 {offsets = [0, 2, 0], sizes = [10, 16, 4], strides = [1, 1, 1]} : vector<12x18x4xf32> to vector<10x16x4xf32>
    %8 = vector.extract_strided_slice %4 {offsets = [1, 0, 0], sizes = [10, 16, 4], strides = [1, 1, 1]} : vector<12x18x4xf32> to vector<10x16x4xf32>
    %9 = vector.extract_strided_slice %4 {offsets = [1, 1, 0], sizes = [10, 16, 4], strides = [1, 1, 1]} : vector<12x18x4xf32> to vector<10x16x4xf32>
    %10 = vector.extract_strided_slice %4 {offsets = [1, 2, 0], sizes = [10, 16, 4], strides = [1, 1, 1]} : vector<12x18x4xf32> to vector<10x16x4xf32>
    %11 = vector.extract_strided_slice %4 {offsets = [2, 0, 0], sizes = [10, 16, 4], strides = [1, 1, 1]} : vector<12x18x4xf32> to vector<10x16x4xf32>
    %12 = vector.extract_strided_slice %4 {offsets = [2, 1, 0], sizes = [10, 16, 4], strides = [1, 1, 1]} : vector<12x18x4xf32> to vector<10x16x4xf32>
    %13 = vector.extract_strided_slice %4 {offsets = [2, 2, 0], sizes = [10, 16, 4], strides = [1, 1, 1]} : vector<12x18x4xf32> to vector<10x16x4xf32>
    %14 = tpu.concatenate %5, %6, %7, %8, %9, %10, %11, %12, %13 in 2 : vector<10x16x4xf32>, vector<10x16x4xf32>, vector<10x16x4xf32>, vector<10x16x4xf32>, vector<10x16x4xf32>, vector<10x16x4xf32>, vector<10x16x4xf32>, vector<10x16x4xf32>, vector<10x16x4xf32> -> vector<10x16x36xf32>
    %15 = vector.shape_cast %14 : vector<10x16x36xf32> to vector<160x36xf32>
    %16 = arith.truncf %15 : vector<160x36xf32> to vector<160x36xbf16>
    %c0_2 = arith.constant 0 : index
    %c0_3 = arith.constant 0 : index
    %17 = vector.load %arg3[%c0_2, %c0_3] : memref<36x4xbf16, #tpu.memory_space<vmem>>, vector<36x4xbf16>
    %cst = arith.constant dense<0.000000e+00> : vector<160x4xf32>
    %18 = tpu.matmul %16, %17, %cst {dimension_numbers = #tpu.dot_dimension_numbers<[1], [0], [0], [1], [0, 0, 1, 1], [], []>} : vector<160x36xbf16>, vector<36x4xbf16>, vector<160x4xf32> -> vector<160x4xf32>
    %c0_4 = arith.constant 0 : index
    %c0_5 = arith.constant 0 : index
    %19 = vector.load %arg4[%c0_4, %c0_5] : memref<1x4xf32, #tpu.memory_space<vmem>>, vector<1x4xf32>
    %20 = vector.broadcast %19 : vector<1x4xf32> to vector<160x4xf32>
    %21 = arith.mulf %18, %20 : vector<160x4xf32>
    %c0_6 = arith.constant 0 : index
    %c0_7 = arith.constant 0 : index
    %22 = vector.load %arg5[%c0_6, %c0_7] : memref<1x4xf32, #tpu.memory_space<vmem>>, vector<1x4xf32>
    %23 = vector.broadcast %22 : vector<1x4xf32> to vector<160x4xf32>
    %24 = arith.addf %21, %23 : vector<160x4xf32>
    %cst_8 = arith.constant 0.000000e+00 : f32
    %25 = vector.broadcast %cst_8 : f32 to vector<160x4xf32>
    %26 = arith.maximumf %24, %25 : vector<160x4xf32>
    %27 = vector.shape_cast %26 : vector<160x4xf32> to vector<10x16x4xf32>
    %28 = tpu.iota {dimensions = array<i32: 0>} : vector<10x16x4xi32>
    %c1_i32 = arith.constant 1 : i32
    %29 = arith.subi %1, %c1_i32 : i32
    %30 = vector.broadcast %29 : i32 to vector<10x16x4xi32>
    %31 = arith.addi %28, %30 : vector<10x16x4xi32>
    %c0_i32 = arith.constant 0 : i32
    %32 = vector.broadcast %c0_i32 : i32 to vector<10x16x4xi32>
    %33 = arith.cmpi sge, %31, %32 : vector<10x16x4xi32>
    %c16_i32 = arith.constant 16 : i32
    %34 = vector.broadcast %c16_i32 : i32 to vector<10x16x4xi32>
    %35 = arith.cmpi slt, %31, %34 : vector<10x16x4xi32>
    %36 = arith.andi %33, %35 : vector<10x16x4xi1>
    %cst_9 = arith.constant 0.000000e+00 : f32
    %37 = vector.broadcast %cst_9 : f32 to vector<10x16x4xf32>
    %38 = arith.select %36, %27, %37 : vector<10x16x4xi1>, vector<10x16x4xf32>
    %cst_10 = arith.constant 0.000000e+00 : f32
    %39 = vector.broadcast %cst_10 : f32 to vector<10x1x4xf32>
    %40 = tpu.concatenate %39, %38, %39 in 1 : vector<10x1x4xf32>, vector<10x16x4xf32>, vector<10x1x4xf32> -> vector<10x18x4xf32>
    %41 = vector.extract_strided_slice %40 {offsets = [0, 0, 0], sizes = [8, 16, 4], strides = [1, 1, 1]} : vector<10x18x4xf32> to vector<8x16x4xf32>
    %42 = vector.extract_strided_slice %40 {offsets = [0, 1, 0], sizes = [8, 16, 4], strides = [1, 1, 1]} : vector<10x18x4xf32> to vector<8x16x4xf32>
    %43 = vector.extract_strided_slice %40 {offsets = [0, 2, 0], sizes = [8, 16, 4], strides = [1, 1, 1]} : vector<10x18x4xf32> to vector<8x16x4xf32>
    %44 = vector.extract_strided_slice %40 {offsets = [1, 0, 0], sizes = [8, 16, 4], strides = [1, 1, 1]} : vector<10x18x4xf32> to vector<8x16x4xf32>
    %45 = vector.extract_strided_slice %40 {offsets = [1, 1, 0], sizes = [8, 16, 4], strides = [1, 1, 1]} : vector<10x18x4xf32> to vector<8x16x4xf32>
    %46 = vector.extract_strided_slice %40 {offsets = [1, 2, 0], sizes = [8, 16, 4], strides = [1, 1, 1]} : vector<10x18x4xf32> to vector<8x16x4xf32>
    %47 = vector.extract_strided_slice %40 {offsets = [2, 0, 0], sizes = [8, 16, 4], strides = [1, 1, 1]} : vector<10x18x4xf32> to vector<8x16x4xf32>
    %48 = vector.extract_strided_slice %40 {offsets = [2, 1, 0], sizes = [8, 16, 4], strides = [1, 1, 1]} : vector<10x18x4xf32> to vector<8x16x4xf32>
    %49 = vector.extract_strided_slice %40 {offsets = [2, 2, 0], sizes = [8, 16, 4], strides = [1, 1, 1]} : vector<10x18x4xf32> to vector<8x16x4xf32>
    %50 = tpu.concatenate %41, %42, %43, %44, %45, %46, %47, %48, %49 in 2 : vector<8x16x4xf32>, vector<8x16x4xf32>, vector<8x16x4xf32>, vector<8x16x4xf32>, vector<8x16x4xf32>, vector<8x16x4xf32>, vector<8x16x4xf32>, vector<8x16x4xf32>, vector<8x16x4xf32> -> vector<8x16x36xf32>
    %51 = vector.shape_cast %50 : vector<8x16x36xf32> to vector<128x36xf32>
    %52 = arith.truncf %51 : vector<128x36xf32> to vector<128x36xbf16>
    %c0_11 = arith.constant 0 : index
    %c0_12 = arith.constant 0 : index
    %53 = vector.load %arg6[%c0_11, %c0_12] : memref<36x4xbf16, #tpu.memory_space<vmem>>, vector<36x4xbf16>
    %cst_13 = arith.constant dense<0.000000e+00> : vector<128x4xf32>
    %54 = tpu.matmul %52, %53, %cst_13 {dimension_numbers = #tpu.dot_dimension_numbers<[1], [0], [0], [1], [0, 0, 1, 1], [], []>} : vector<128x36xbf16>, vector<36x4xbf16>, vector<128x4xf32> -> vector<128x4xf32>
    %55 = vector.extract_strided_slice %4 {offsets = [2, 1, 0], sizes = [8, 16, 4], strides = [1, 1, 1]} : vector<12x18x4xf32> to vector<8x16x4xf32>
    %56 = vector.shape_cast %55 : vector<8x16x4xf32> to vector<128x4xf32>
    %c0_14 = arith.constant 0 : index
    %c0_15 = arith.constant 0 : index
    %57 = vector.load %arg7[%c0_14, %c0_15] : memref<1x4xf32, #tpu.memory_space<vmem>>, vector<1x4xf32>
    %58 = vector.broadcast %57 : vector<1x4xf32> to vector<128x4xf32>
    %59 = arith.mulf %54, %58 : vector<128x4xf32>
    %c0_16 = arith.constant 0 : index
    %c0_17 = arith.constant 0 : index
    %60 = vector.load %arg8[%c0_16, %c0_17] : memref<1x4xf32, #tpu.memory_space<vmem>>, vector<1x4xf32>
    %61 = vector.broadcast %60 : vector<1x4xf32> to vector<128x4xf32>
    %62 = arith.addf %59, %61 : vector<128x4xf32>
    %63 = arith.addf %62, %56 : vector<128x4xf32>
    %cst_18 = arith.constant 0.000000e+00 : f32
    %64 = vector.broadcast %cst_18 : f32 to vector<128x4xf32>
    %65 = arith.maximumf %63, %64 : vector<128x4xf32>
    %66 = vector.shape_cast %65 : vector<128x4xf32> to vector<8x16x4xf32>
    %c0_19 = arith.constant 0 : index
    %c0_20 = arith.constant 0 : index
    %c0_21 = arith.constant 0 : index
    %c0_22 = arith.constant 0 : index
    %67 = vector.load %arg9[%c0_19, %c0_20, %c0_21, %c0_22] : memref<1x8x16x4xf32, #tpu.memory_space<vmem>>, vector<1x8x16x4xf32>
    %68 = vector.shape_cast %67 : vector<1x8x16x4xf32> to vector<8x16x4xf32>
    %69 = vector.shape_cast %66 : vector<8x16x4xf32> to vector<1x8x16x4xf32>
    tpu.vector_store %arg9[%c0_19, %c0_20, %c0_21, %c0_22], %69 {strides = array<i32>} : memref<1x8x16x4xf32, #tpu.memory_space<vmem>>, vector<1x8x16x4xf32>,
    return
  }
  func.func @transform_0(%arg0: i32, %arg1: i32) -> (i32, i32, i32, i32) {
    %c0_i32 = arith.constant 0 : i32
    %c0_i32_0 = arith.constant 0 : i32
    %c0_i32_1 = arith.constant 0 : i32
    %c0_i32_2 = arith.constant 0 : i32
    return %arg0, %c0_i32, %c0_i32_0, %c0_i32_1 : i32, i32, i32, i32
  }
  func.func @transform_1(%arg0: i32, %arg1: i32) -> (i32, i32) {
    %c0_i32 = arith.constant 0 : i32
    %c0_i32_0 = arith.constant 0 : i32
    %c0_i32_1 = arith.constant 0 : i32
    return %c0_i32, %c0_i32_0 : i32, i32
  }
  func.func @transform_2(%arg0: i32, %arg1: i32) -> (i32, i32) {
    %c0_i32 = arith.constant 0 : i32
    %c0_i32_0 = arith.constant 0 : i32
    %c0_i32_1 = arith.constant 0 : i32
    return %c0_i32, %c0_i32_0 : i32, i32
  }
  func.func @transform_3(%arg0: i32, %arg1: i32) -> (i32, i32) {
    %c0_i32 = arith.constant 0 : i32
    %c0_i32_0 = arith.constant 0 : i32
    %c0_i32_1 = arith.constant 0 : i32
    return %c0_i32, %c0_i32_0 : i32, i32
  }
  func.func @transform_4(%arg0: i32, %arg1: i32) -> (i32, i32) {
    %c0_i32 = arith.constant 0 : i32
    %c0_i32_0 = arith.constant 0 : i32
    %c0_i32_1 = arith.constant 0 : i32
    return %c0_i32, %c0_i32_0 : i32, i32
  }
  func.func @transform_5(%arg0: i32, %arg1: i32) -> (i32, i32) {
    %c0_i32 = arith.constant 0 : i32
    %c0_i32_0 = arith.constant 0 : i32
    %c0_i32_1 = arith.constant 0 : i32
    return %c0_i32, %c0_i32_0 : i32, i32
  }
  func.func @transform_6(%arg0: i32, %arg1: i32) -> (i32, i32) {
    %c0_i32 = arith.constant 0 : i32
    %c0_i32_0 = arith.constant 0 : i32
    %c0_i32_1 = arith.constant 0 : i32
    return %c0_i32, %c0_i32_0 : i32, i32
  }
  func.func @transform_7(%arg0: i32, %arg1: i32) -> (i32, i32, i32, i32) {
    %c0_i32 = arith.constant 0 : i32
    %c0_i32_0 = arith.constant 0 : i32
    %c0_i32_1 = arith.constant 0 : i32
    return %arg0, %arg1, %c0_i32, %c0_i32_0 : i32, i32, i32, i32
  }
}

</mosaic_0001>

<llo_original>
// kernel: basic_block_forward.1
$region0: #{basic_block_forward.1}
  #allocation0 [shape = 'u32[]', space=smem, size = 0x4, offset = 0x4, fixed_abs, tag = 'smem constant byte address 0x4 - core index']
  #allocation1 [shape = 'u32[144,128]{1,0:T(1,128)}', space=vmem, size = 0x12000, scoped, tag = 'internal scratch']
  %s0 = inlined_call_operand.vmem [shape: f32[2,20,18,4], index: 0, kind: input, shape index: {}]
  %s1 = inlined_call_operand.vmem [shape: bf16[36,4], index: 1, kind: input, shape index: {}]
  %s2 = inlined_call_operand.vmem [shape: f32[1,4], index: 2, kind: input, shape index: {}]
  %s3 = inlined_call_operand.vmem [shape: f32[1,4], index: 3, kind: input, shape index: {}]
  %s4 = inlined_call_operand.vmem [shape: bf16[36,4], index: 4, kind: input, shape index: {}]
  %s5 = inlined_call_operand.vmem [shape: f32[1,4], index: 5, kind: input, shape index: {}]
  %s6 = inlined_call_operand.vmem [shape: f32[1,4], index: 6, kind: input, shape index: {}]
  %s7 = inlined_call_operand.vmem [shape: f32[2,16,16,4], index: 7, kind: output, shape index: {}]
  %s8 = sld [smem:[#allocation0]]
  $region61: #{basic_block_forward.1} parent=0
    _
  %s10 = ssub.s32 1, %s8
  %s11 = scalar_select 0, %s10, %s8
  loop: start=0, step=1, limit=6
  $region2: #{basic_block_forward.1} parent=0 // loop_pre_header
    _
  $region3: #{basic_block_forward.1} parent=0 // loop_header
    %s13 = sphi 0, %s17
    %p14 = scmp.ge.s32.totalorder %s13, 6
    %s20 = sphi 0, %s32
    %s21 = sphi 0, %s28
    %s22 = sphi 0, %s20
    %s23 = sphi 0, %s21
    %s24 = sphi 0, %s22
    %s25 = sphi 0, %s23
    %s35 = sphi 0, %s37
    %s38 = sphi 0, %s35
    %s39 = sphi 0, %s38
    %s55 = sphi 0, %s39
    %s59 = sphi 0, %s59
    %s61 = sphi 0, %s59
    %s62 = sphi 0, %s61
    %s76 = sphi 0, %s62
    %s80 = sphi 0, %s80
    %s82 = sphi 0, %s80
    %s83 = sphi 0, %s82
    %s97 = sphi 0, %s83
    %s101 = sphi 0, %s101
    %s103 = sphi 0, %s101
    %s104 = sphi 0, %s103
    %s118 = sphi 0, %s104
    %s122 = sphi 0, %s122
    %s124 = sphi 0, %s122
    %s125 = sphi 0, %s124
    %s139 = sphi 0, %s125
    %s143 = sphi 0, %s143
    %s145 = sphi 0, %s143
    %s146 = sphi 0, %s145
    %s160 = sphi 0, %s146
    %s164 = sphi 0, %s164
    %s166 = sphi 0, %s164
    %s167 = sphi 0, %s166
    %s181 = sphi 0, %s167
    %s189 = sphi 0, %s191
    %s192 = sphi 0, %s189
    %s193 = sphi 0, %s192
    %s209 = sphi 0, %s193
  $region4: #{basic_block_forward.1} parent=0 // loop_header_branch
    %16 = sbr.rel (%p14) target = $region8
  $region5: #{basic_block_forward.1} parent=0 // loop_body
    %s18 = ssub.s32 %s13, 1
    %s19 = ssub.s32 %s13, 2
    %s26 = sadd.s32 1, %s21
    %p27 = scmp.ge.s32.totalorder %s26, 2
    %s28 = scalar_select %p27, 0, %s26
    %s29 = sadd.s32 1, %s20
    %s30 = scalar_select %p27, %s29, %s20
    %p31 = scmp.ge.s32.totalorder %s30, 2
    %s32 = scalar_select %p31, 0, %s30
    %s33 = ssub.s32 %s20, %s32
    %p34 = scmp.eq.s32.totalorder %s33, 0
    %s36 = sadd.s32 %s35, 1
    %s37 = scalar_select %p34, %s35, %s36
    %p40 = pneg %p34
    %p41 = scmp.eq.s32.totalorder %s13, 3
    %p42 = por %p40, %p41
    %p43 = scmp.ne.s32.totalorder %s35, %s38
    %p44 = scmp.eq.s32.totalorder %s13, 0
    %p45 = por %p43, %p44
    %p46 = scmp.ne.s32.totalorder %s35, %s38
    %p47 = scmp.eq.s32.totalorder %s18, 3
    %p48 = por %p46, %p47
    %p49 = scmp.ne.s32.totalorder %s38, %s39
    %p50 = scmp.eq.s32.totalorder %s18, 0
    %p51 = por %p49, %p50
    %p52 = scmp.ne.s32.totalorder %s38, %s39
    %p53 = scmp.eq.s32.totalorder %s19, 3
    %p54 = por %p52, %p53
    %p56 = scmp.ne.s32.totalorder %s39, %s55
    %p57 = scmp.eq.s32.totalorder %s19, 0
    %p58 = por %p56, %p57
    %s60 = sadd.s32 %s59, 1
    %p63 = scmp.eq.s32.totalorder %s13, 3
    %p64 = scmp.ne.s32.totalorder %s59, %s61
    %p65 = scmp.eq.s32.totalorder %s13, 0
    %p66 = por %p64, %p65
    %p67 = scmp.ne.s32.totalorder %s59, %s61
    %p68 = scmp.eq.s32.totalorder %s18, 3
    %p69 = por %p67, %p68
    %p70 = scmp.ne.s32.totalorder %s61, %s62
    %p71 = scmp.eq.s32.totalorder %s18, 0
    %p72 = por %p70, %p71
    %p73 = scmp.ne.s32.totalorder %s61, %s62
    %p74 = scmp.eq.s32.totalorder %s19, 3
    %p75 = por %p73, %p74
    %p77 = scmp.ne.s32.totalorder %s62, %s76
    %p78 = scmp.eq.s32.totalorder %s19, 0
    %p79 = por %p77, %p78
    %s81 = sadd.s32 %s80, 1
    %p84 = scmp.eq.s32.totalorder %s13, 3
    %p85 = scmp.ne.s32.totalorder %s80, %s82
    %p86 = scmp.eq.s32.totalorder %s13, 0
    %p87 = por %p85, %p86
    %p88 = scmp.ne.s32.totalorder %s80, %s82
    %p89 = scmp.eq.s32.totalorder %s18, 3
    %p90 = por %p88, %p89
    %p91 = scmp.ne.s32.totalorder %s82, %s83
    %p92 = scmp.eq.s32.totalorder %s18, 0
    %p93 = por %p91, %p92
    %p94 = scmp.ne.s32.totalorder %s82, %s83
    %p95 = scmp.eq.s32.totalorder %s19, 3
    %p96 = por %p94, %p95
    %p98 = scmp.ne.s32.totalorder %s83, %s97
    %p99 = scmp.eq.s32.totalorder %s19, 0
    %p100 = por %p98, %p99
    %s102 = sadd.s32 %s101, 1
    %p105 = scmp.eq.s32.totalorder %s13, 3
    %p106 = scmp.ne.s32.totalorder %s101, %s103
    %p107 = scmp.eq.s32.totalorder %s13, 0
    %p108 = por %p106, %p107
    %p109 = scmp.ne.s32.totalorder %s101, %s103
    %p110 = scmp.eq.s32.totalorder %s18, 3
    %p111 = por %p109, %p110
    %p112 = scmp.ne.s32.totalorder %s103, %s104
    %p113 = scmp.eq.s32.totalorder %s18, 0
    %p114 = por %p112, %p113
    %p115 = scmp.ne.s32.totalorder %s103, %s104
    %p116 = scmp.eq.s32.totalorder %s19, 3
    %p117 = por %p115, %p116
    %p119 = scmp.ne.s32.totalorder %s104, %s118
    %p120 = scmp.eq.s32.totalorder %s19, 0
    %p121 = por %p119, %p120
    %s123 = sadd.s32 %s122, 1
    %p126 = scmp.eq.s32.totalorder %s13, 3
    %p127 = scmp.ne.s32.totalorder %s122, %s124
    %p128 = scmp.eq.s32.totalorder %s13, 0
    %p129 = por %p127, %p128
    %p130 = scmp.ne.s32.totalorder %s122, %s124
    %p131 = scmp.eq.s32.totalorder %s18, 3
    %p132 = por %p130, %p131
    %p133 = scmp.ne.s32.totalorder %s124, %s125
    %p134 = scmp.eq.s32.totalorder %s18, 0
    %p135 = por %p133, %p134
    %p136 = scmp.ne.s32.totalorder %s124, %s125
    %p137 = scmp.eq.s32.totalorder %s19, 3
    %p138 = por %p136, %p137
    %p140 = scmp.ne.s32.totalorder %s125, %s139
    %p141 = scmp.eq.s32.totalorder %s19, 0
    %p142 = por %p140, %p141
    %s144 = sadd.s32 %s143, 1
    %p147 = scmp.eq.s32.totalorder %s13, 3
    %p148 = scmp.ne.s32.totalorder %s143, %s145
    %p149 = scmp.eq.s32.totalorder %s13, 0
    %p150 = por %p148, %p149
    %p151 = scmp.ne.s32.totalorder %s143, %s145
    %p152 = scmp.eq.s32.totalorder %s18, 3
    %p153 = por %p151, %p152
    %p154 = scmp.ne.s32.totalorder %s145, %s146
    %p155 = scmp.eq.s32.totalorder %s18, 0
    %p156 = por %p154, %p155
    %p157 = scmp.ne.s32.totalorder %s145, %s146
    %p158 = scmp.eq.s32.totalorder %s19, 3
    %p159 = por %p157, %p158
    %p161 = scmp.ne.s32.totalorder %s146, %s160
    %p162 = scmp.eq.s32.totalorder %s19, 0
    %p163 = por %p161, %p162
    %s165 = sadd.s32 %s164, 1
    %p168 = scmp.eq.s32.totalorder %s13, 3
    %p169 = scmp.ne.s32.totalorder %s164, %s166
    %p170 = scmp.eq.s32.totalorder %s13, 0
    %p171 = por %p169, %p170
    %p172 = scmp.ne.s32.totalorder %s164, %s166
    %p173 = scmp.eq.s32.totalorder %s18, 3
    %p174 = por %p172, %p173
    %p175 = scmp.ne.s32.totalorder %s166, %s167
    %p176 = scmp.eq.s32.totalorder %s18, 0
    %p177 = por %p175, %p176
    %p178 = scmp.ne.s32.totalorder %s166, %s167
    %p179 = scmp.eq.s32.totalorder %s19, 3
    %p180 = por %p178, %p179
    %p182 = scmp.ne.s32.totalorder %s167, %s181
    %p183 = scmp.eq.s32.totalorder %s19, 0
    %p184 = por %p182, %p183
    %s185 = ssub.s32 %s20, %s32
    %s186 = ssub.s32 %s21, %s28
    %s187 = sor.u32 %s185, %s186
    %p188 = scmp.eq.s32.totalorder %s187, 0
    %s190 = sadd.s32 %s189, 1
    %s191 = scalar_select %p188, %s189, %s190
    %p194 = pneg %p188
    %p195 = scmp.eq.s32.totalorder %s13, 3
    %p196 = por %p194, %p195
    %p197 = scmp.ne.s32.totalorder %s189, %s192
    %p198 = scmp.eq.s32.totalorder %s13, 0
    %p199 = por %p197, %p198
    %p200 = scmp.ne.s32.totalorder %s189, %s192
    %p201 = scmp.eq.s32.totalorder %s18, 3
    %p202 = por %p200, %p201
    %p203 = scmp.ne.s32.totalorder %s192, %s193
    %p204 = scmp.eq.s32.totalorder %s18, 0
    %p205 = por %p203, %p204
    %p206 = scmp.ne.s32.totalorder %s192, %s193
    %p207 = scmp.eq.s32.totalorder %s19, 3
    %p208 = por %p206, %p207
    %p210 = scmp.ne.s32.totalorder %s193, %s209
    %p211 = scmp.eq.s32.totalorder %s19, 0
    %p212 = por %p210, %p211
    %p213 = scmp.le.s32.totalorder 1, %s13
    %p214 = scmp.lt.s32.totalorder %s13, 5
    %p215 = pnand %p213, %p214
    %p216 = pneg %p215
    // Predicated region
    $region9: #{basic_block_forward.1} parent=5 // pred_check
      _
    $region10: #{basic_block_forward.1} parent=5 // pred_check_branch
      %218 = sbr.rel (%p215) target = $region12
    $region11: #{basic_block_forward.1} parent=5 // pred_region
      %s219 = ssub.s32 %s13, 1
      // Predicated region
      $region13: #{basic_block_forward.1} parent=11 // pred_check
        %p220 = pneg %p72
      $region14: #{basic_block_forward.1} parent=11 // pred_check_branch
        %222 = sbr.rel (%p220) target = $region16
      $region15: #{basic_block_forward.1} parent=11 // pred_region
        _
      $region16: #{basic_block_forward.1} parent=11 // pred_fallthru
        _
      // Predicated region
      $region17: #{basic_block_forward.1} parent=11 // pred_check
        %p223 = pneg %p93
      $region18: #{basic_block_forward.1} parent=11 // pred_check_branch
        %225 = sbr.rel (%p223) target = $region20
      $region19: #{basic_block_forward.1} parent=11 // pred_region
        _
      $region20: #{basic_block_forward.1} parent=11 // pred_fallthru
        _
      // Predicated region
      $region21: #{basic_block_forward.1} parent=11 // pred_check
        %p226 = pneg %p114
      $region22: #{basic_block_forward.1} parent=11 // pred_check_branch
        %228 = sbr.rel (%p226) target = $region24
      $region23: #{basic_block_forward.1} parent=11 // pred_region
        _
      $region24: #{basic_block_forward.1} parent=11 // pred_fallthru
        _
      // Predicated region
      $region25: #{basic_block_forward.1} parent=11 // pred_check
        %p229 = pneg %p135
      $region26: #{basic_block_forward.1} parent=11 // pred_check_branch
        %231 = sbr.rel (%p229) target = $region28
      $region27: #{basic_block_forward.1} parent=11 // pred_region
        _
      $region28: #{basic_block_forward.1} parent=11 // pred_fallthru
        _
      // Predicated region
      $region29: #{basic_block_forward.1} parent=11 // pred_check
        %p232 = pneg %p156
      $region30: #{basic_block_forward.1} parent=11 // pred_check_branch
        %234 = sbr.rel (%p232) target = $region32
      $region31: #{basic_block_forward.1} parent=11 // pred_region
        _
      $region32: #{basic_block_forward.1} parent=11 // pred_fallthru
        _
      // Predicated region
      $region33: #{basic_block_forward.1} parent=11 // pred_check
        %p235 = pneg %p177
      $region34: #{basic_block_forward.1} parent=11 // pred_check_branch
        %237 = sbr.rel (%p235) target = $region36
      $region35: #{basic_block_forward.1} parent=11 // pred_region
        _
      $region36: #{basic_block_forward.1} parent=11 // pred_fallthru
        _
    $region12: #{basic_block_forward.1} parent=5 // pred_fallthru
      _
    %p238 = scmp.lt.s32.totalorder %s13, 4
    // Predicated region
    $region37: #{basic_block_forward.1} parent=5 // pred_check
      %p239 = pneg %p238
    $region38: #{basic_block_forward.1} parent=5 // pred_check_branch
      %241 = sbr.rel (%p239) target = $region40
    $region39: #{basic_block_forward.1} parent=5 // pred_region
      // Predicated region
      $region41: #{basic_block_forward.1} parent=39 // pred_check
        %p242 = pneg %p45
      $region42: #{basic_block_forward.1} parent=39 // pred_check_branch
        %244 = sbr.rel (%p242) target = $region44
      $region43: #{basic_block_forward.1} parent=39 // pred_region
        %p245 = scmp.lt.s32.totalorder %s20, 1
        %s246 = scalar_select %p245, %s20, 1
        %s247 = smul.addr %s246, 60
        %s248 = smul.addr %s247, 8
        %s249 = scalar_lea.vmem %s0, %s248
      $region44: #{basic_block_forward.1} parent=39 // pred_fallthru
        _
    $region40: #{basic_block_forward.1} parent=5 // pred_fallthru
      _
    %p250 = scmp.le.s32.totalorder 1, %s13
    %p251 = scmp.lt.s32.totalorder %s13, 5
    %p252 = pnand %p250, %p251
    %p253 = pneg %p252
    // Predicated region
    $region45: #{basic_block_forward.1} parent=5 // pred_check
      _
    $region46: #{basic_block_forward.1} parent=5 // pred_check_branch
      %255 = sbr.rel (%p252) target = $region48
    $region47: #{basic_block_forward.1} parent=5 // pred_region
      %s256 = ssub.s32 %s13, 1
      %p257 = scmp.lt.s32.totalorder %s22, 1
      %s258 = scalar_select %p257, %s22, 1
      %s259 = smul.addr %s258, 60
      %s260 = smul.addr %s259, 8
      %s261 = scalar_lea.vmem %s0, %s260
      %p262 = pneg %p51
      %p263 = pneg %p48
      %p264 = pneg %p72
      %p265 = pneg %p69
      %p266 = pneg %p93
      %p267 = pneg %p90
      %p268 = pneg %p114
      %p269 = pneg %p111
      %p270 = pneg %p135
      %p271 = pneg %p132
      %p272 = pneg %p156
      %p273 = pneg %p153
      %p274 = pneg %p177
      %p275 = pneg %p174
      %p276 = pneg %p205
      %p277 = pneg %p202
      %s278 = smul.u32 8, %s23
      %p279 = scmp.lt.s32.totalorder %s22, 1
      %s280 = scalar_select %p279, %s22, 1
      %p281 = scmp.lt.s32.totalorder %s278, 15
      %s282 = scalar_select %p281, %s278, 15
      %s283 = smul.addr %s282, 2
      %s284 = smul.addr %s280, 32
      %s285 = sadd.s32 %s283, %s284
      %s286 = smul.addr %s285, 8
      %s287 = scalar_lea.vmem %s7, %s286
      %p288 = scmp.lt.s32.totalorder %s22, 1
      %s289 = scalar_select %p288, %s22, 1
      %s290 = smul.addr %s289, 60
      %s291 = smul.addr %s290, 8
      %s292 = scalar_lea.vmem %s0, %s291
      %s293 = smul.u32 8, %s23
      %p294 = scmp.lt.s32.totalorder %s22, 1
      %s295 = scalar_select %p294, %s22, 1
      %p296 = scmp.lt.s32.totalorder %s293, 15
      %s297 = scalar_select %p296, %s293, 15
      %s298 = smul.addr %s297, 2
      %s299 = smul.addr %s295, 32
      %s300 = sadd.s32 %s298, %s299
      %s301 = smul.addr %s300, 8
      %s302 = scalar_lea.vmem %s7, %s301
      %s303 = smul.u32 8, %s23
      %s305 = smul.u32 %s23, 8
      %s306 = smul.u32 %s305, 24
      %s307 = scalar_lea.vmem %s292, %s306
      %v308 = vld [vmem:[%s307] sm:$0xff]
      %v309 = vld [vmem:[%s307 + $0x8] sm:$0xff]
      %v310 = vld [vmem:[%s307 + $0x10] sm:$0x3]
      %v311 = vld [vmem:[%s307 + $0x18] sm:$0xff]
      %v312 = vld [vmem:[%s307 + $0x20] sm:$0xff]
      %v313 = vld [vmem:[%s307 + $0x28] sm:$0x3]
      %v314 = vld [vmem:[%s307 + $0x30] sm:$0xff]
      %v315 = vld [vmem:[%s307 + $0x38] sm:$0xff]
      %v316 = vld [vmem:[%s307 + $0x40] sm:$0x3]
      %v317 = vld [vmem:[%s307 + $0x48] sm:$0xff]
      %v318 = vld [vmem:[%s307 + $0x50] sm:$0xff]
      %v319 = vld [vmem:[%s307 + $0x58] sm:$0x3]
      %v320 = vld [vmem:[%s307 + $0x60] sm:$0xff]
      %v321 = vld [vmem:[%s307 + $0x68] sm:$0xff]
      %v322 = vld [vmem:[%s307 + $0x70] sm:$0x3]
      %v323 = vld [vmem:[%s307 + $0x78] sm:$0xff]
      %v324 = vld [vmem:[%s307 + $0x80] sm:$0xff]
      %v325 = vld [vmem:[%s307 + $0x88] sm:$0x3]
      %v326 = vld [vmem:[%s307 + $0x90] sm:$0xff]
      %v327 = vld [vmem:[%s307 + $0x98] sm:$0xff]
      %v328 = vld [vmem:[%s307 + $0xa0] sm:$0x3]
      %v329 = vld [vmem:[%s307 + $0xa8] sm:$0xff]
      %v330 = vld [vmem:[%s307 + $0xb0] sm:$0xff]
      %v331 = vld [vmem:[%s307 + $0xb8] sm:$0x3]
      %v332 = vld [vmem:[%s307 + $0xc0] sm:$0xff]
      %v333 = vld [vmem:[%s307 + $0xc8] sm:$0xff]
      %v334 = vld [vmem:[%s307 + $0xd0] sm:$0x3]
      %v335 = vld [vmem:[%s307 + $0xd8] sm:$0xff]
      %v336 = vld [vmem:[%s307 + $0xe0] sm:$0xff]
      %v337 = vld [vmem:[%s307 + $0xe8] sm:$0x3]
      %v338 = vld [vmem:[%s307 + $0xf0] sm:$0xff]
      %v339 = vld [vmem:[%s307 + $0xf8] sm:$0xff]
      %v340 = vld [vmem:[%s307 + $0x100] sm:$0x3]
      %v341 = vld [vmem:[%s307 + $0x108] sm:$0xff]
      %v342 = vld [vmem:[%s307 + $0x110] sm:$0xff]
      %v343 = vld [vmem:[%s307 + $0x118] sm:$0x3]
      %vm374 = vcmask 1046528
      %v375 = vrot.slane %v308, 1
      %v376 = vrot.slane %v309, 1
      %v377 = vsel %vm374, %v375, %v376
      %v378 = vrot.slane %v310, 1
      %v379 = vsel %vm374, %v376, %v378
      %v380 = vrot.slane %v311, 1
      %v381 = vrot.slane %v312, 1
      %v382 = vsel %vm374, %v380, %v381
      %v383 = vrot.slane %v313, 1
      %v384 = vsel %vm374, %v381, %v383
      %v385 = vrot.slane %v314, 1
      %v386 = vrot.slane %v315, 1
      %v387 = vsel %vm374, %v385, %v386
      %v388 = vrot.slane %v316, 1
      %v389 = vsel %vm374, %v386, %v388
      %v390 = vrot.slane %v317, 1
      %v391 = vrot.slane %v318, 1
      %v392 = vsel %vm374, %v390, %v391
      %v393 = vrot.slane %v319, 1
      %v394 = vsel %vm374, %v391, %v393
      %v395 = vrot.slane %v320, 1
      %v396 = vrot.slane %v321, 1
      %v397 = vsel %vm374, %v395, %v396
      %v398 = vrot.slane %v322, 1
      %v399 = vsel %vm374, %v396, %v398
      %v400 = vrot.slane %v323, 1
      %v401 = vrot.slane %v324, 1
      %v402 = vsel %vm374, %v400, %v401
      %v403 = vrot.slane %v325, 1
      %v404 = vsel %vm374, %v401, %v403
      %v405 = vrot.slane %v326, 1
      %v406 = vrot.slane %v327, 1
      %v407 = vsel %vm374, %v405, %v406
      %v408 = vrot.slane %v328, 1
      %v409 = vsel %vm374, %v406, %v408
      %v410 = vrot.slane %v329, 1
      %v411 = vrot.slane %v330, 1
      %v412 = vsel %vm374, %v410, %v411
      %v413 = vrot.slane %v331, 1
      %v414 = vsel %vm374, %v411, %v413
      %v415 = vrot.slane %v332, 1
      %v416 = vrot.slane %v333, 1
      %v417 = vsel %vm374, %v415, %v416
      %v418 = vrot.slane %v334, 1
      %v419 = vsel %vm374, %v416, %v418
      %v420 = vrot.slane %v335, 1
      %v421 = vrot.slane %v336, 1
      %v422 = vsel %vm374, %v420, %v421
      %v423 = vrot.slane %v337, 1
      %v424 = vsel %vm374, %v421, %v423
      %425 = vrot.lane.b32.xlu0 %v377, 4
      %v426 = vpop.permute.xlu0 %425
      %427 = vrot.lane.b32.xlu0 %v379, 4
      %v428 = vpop.permute.xlu0 %427
      %429 = vrot.lane.b32.xlu0 %v382, 4
      %v430 = vpop.permute.xlu0 %429
      %431 = vrot.lane.b32.xlu0 %v384, 4
      %v432 = vpop.permute.xlu0 %431
      %433 = vrot.lane.b32.xlu0 %v387, 4
      %v434 = vpop.permute.xlu0 %433
      %435 = vrot.lane.b32.xlu0 %v389, 4
      %v436 = vpop.permute.xlu0 %435
      %437 = vrot.lane.b32.xlu0 %v392, 4
      %v438 = vpop.permute.xlu0 %437
      %439 = vrot.lane.b32.xlu0 %v394, 4
      %v440 = vpop.permute.xlu0 %439
      %441 = vrot.lane.b32.xlu0 %v397, 4
      %v442 = vpop.permute.xlu0 %441
      %443 = vrot.lane.b32.xlu0 %v399, 4
      %v444 = vpop.permute.xlu0 %443
      %445 = vrot.lane.b32.xlu0 %v402, 4
      %v446 = vpop.permute.xlu0 %445
      %447 = vrot.lane.b32.xlu0 %v404, 4
      %v448 = vpop.permute.xlu0 %447
      %449 = vrot.lane.b32.xlu0 %v407, 4
      %v450 = vpop.permute.xlu0 %449
      %451 = vrot.lane.b32.xlu0 %v409, 4
      %v452 = vpop.permute.xlu0 %451
      %453 = vrot.lane.b32.xlu0 %v412, 4
      %v454 = vpop.permute.xlu0 %453
      %455 = vrot.lane.b32.xlu0 %v414, 4
      %v456 = vpop.permute.xlu0 %455
      %457 = vrot.lane.b32.xlu0 %v417, 4
      %v458 = vpop.permute.xlu0 %457
      %459 = vrot.lane.b32.xlu0 %v419, 4
      %v460 = vpop.permute.xlu0 %459
      %461 = vrot.lane.b32.xlu0 %v422, 4
      %v462 = vpop.permute.xlu0 %461
      %463 = vrot.lane.b32.xlu0 %v424, 4
      %v464 = vpop.permute.xlu0 %463
      %vm485 = vcmask 1045504
      %v486 = vrot.slane %v308, 2
      %v487 = vrot.slane %v309, 2
      %v488 = vsel %vm485, %v486, %v487
      %v489 = vrot.slane %v310, 2
      %v490 = vsel %vm485, %v487, %v489
      %v491 = vrot.slane %v311, 2
      %v492 = vrot.slane %v312, 2
      %v493 = vsel %vm485, %v491, %v492
      %v494 = vrot.slane %v313, 2
      %v495 = vsel %vm485, %v492, %v494
      %v496 = vrot.slane %v314, 2
      %v497 = vrot.slane %v315, 2
      %v498 = vsel %vm485, %v496, %v497
      %v499 = vrot.slane %v316, 2
      %v500 = vsel %vm485, %v497, %v499
      %v501 = vrot.slane %v317, 2
      %v502 = vrot.slane %v318, 2
      %v503 = vsel %vm485, %v501, %v502
      %v504 = vrot.slane %v319, 2
      %v505 = vsel %vm485, %v502, %v504
      %v506 = vrot.slane %v320, 2
      %v507 = vrot.slane %v321, 2
      %v508 = vsel %vm485, %v506, %v507
      %v509 = vrot.slane %v322, 2
      %v510 = vsel %vm485, %v507, %v509
      %v511 = vrot.slane %v323, 2
      %v512 = vrot.slane %v324, 2
      %v513 = vsel %vm485, %v511, %v512
      %v514 = vrot.slane %v325, 2
      %v515 = vsel %vm485, %v512, %v514
      %v516 = vrot.slane %v326, 2
      %v517 = vrot.slane %v327, 2
      %v518 = vsel %vm485, %v516, %v517
      %v519 = vrot.slane %v328, 2
      %v520 = vsel %vm485, %v517, %v519
      %v521 = vrot.slane %v329, 2
      %v522 = vrot.slane %v330, 2
      %v523 = vsel %vm485, %v521, %v522
      %v524 = vrot.slane %v331, 2
      %v525 = vsel %vm485, %v522, %v524
      %v526 = vrot.slane %v332, 2
      %v527 = vrot.slane %v333, 2
      %v528 = vsel %vm485, %v526, %v527
      %v529 = vrot.slane %v334, 2
      %v530 = vsel %vm485, %v527, %v529
      %v531 = vrot.slane %v335, 2
      %v532 = vrot.slane %v336, 2
      %v533 = vsel %vm485, %v531, %v532
      %v534 = vrot.slane %v337, 2
      %v535 = vsel %vm485, %v532, %v534
      %536 = vrot.lane.b32.xlu0 %v488, 8
      %v537 = vpop.permute.xlu0 %536
      %538 = vrot.lane.b32.xlu0 %v490, 8
      %v539 = vpop.permute.xlu0 %538
      %540 = vrot.lane.b32.xlu0 %v493, 8
      %v541 = vpop.permute.xlu0 %540
      %542 = vrot.lane.b32.xlu0 %v495, 8
      %v543 = vpop.permute.xlu0 %542
      %544 = vrot.lane.b32.xlu0 %v498, 8
      %v545 = vpop.permute.xlu0 %544
      %546 = vrot.lane.b32.xlu0 %v500, 8
      %v547 = vpop.permute.xlu0 %546
      %548 = vrot.lane.b32.xlu0 %v503, 8
      %v549 = vpop.permute.xlu0 %548
      %550 = vrot.lane.b32.xlu0 %v505, 8
      %v551 = vpop.permute.xlu0 %550
      %552 = vrot.lane.b32.xlu0 %v508, 8
      %v553 = vpop.permute.xlu0 %552
      %554 = vrot.lane.b32.xlu0 %v510, 8
      %v555 = vpop.permute.xlu0 %554
      %556 = vrot.lane.b32.xlu0 %v513, 8
      %v557 = vpop.permute.xlu0 %556
      %558 = vrot.lane.b32.xlu0 %v515, 8
      %v559 = vpop.permute.xlu0 %558
      %560 = vrot.lane.b32.xlu0 %v518, 8
      %v561 = vpop.permute.xlu0 %560
      %562 = vrot.lane.b32.xlu0 %v520, 8
      %v563 = vpop.permute.xlu0 %562
      %564 = vrot.lane.b32.xlu0 %v523, 8
      %v565 = vpop.permute.xlu0 %564
      %566 = vrot.lane.b32.xlu0 %v525, 8
      %v567 = vpop.permute.xlu0 %566
      %568 = vrot.lane.b32.xlu0 %v528, 8
      %v569 = vpop.permute.xlu0 %568
      %570 = vrot.lane.b32.xlu0 %v530, 8
      %v571 = vpop.permute.xlu0 %570
      %572 = vrot.lane.b32.xlu0 %v533, 8
      %v573 = vpop.permute.xlu0 %572
      %574 = vrot.lane.b32.xlu0 %v535, 8
      %v575 = vpop.permute.xlu0 %574
      %598 = vrot.lane.b32.xlu0 %v311, 12
      %v599 = vpop.permute.xlu0 %598
      %600 = vrot.lane.b32.xlu0 %v312, 12
      %v601 = vpop.permute.xlu0 %600
      %602 = vrot.lane.b32.xlu0 %v314, 12
      %v603 = vpop.permute.xlu0 %602
      %604 = vrot.lane.b32.xlu0 %v315, 12
      %v605 = vpop.permute.xlu0 %604
      %606 = vrot.lane.b32.xlu0 %v317, 12
      %v607 = vpop.permute.xlu0 %606
      %608 = vrot.lane.b32.xlu0 %v318, 12
      %v609 = vpop.permute.xlu0 %608
      %610 = vrot.lane.b32.xlu0 %v320, 12
      %v611 = vpop.permute.xlu0 %610
      %612 = vrot.lane.b32.xlu0 %v321, 12
      %v613 = vpop.permute.xlu0 %612
      %614 = vrot.lane.b32.xlu0 %v323, 12
      %v615 = vpop.permute.xlu0 %614
      %616 = vrot.lane.b32.xlu0 %v324, 12
      %v617 = vpop.permute.xlu0 %616
      %618 = vrot.lane.b32.xlu0 %v326, 12
      %v619 = vpop.permute.xlu0 %618
      %620 = vrot.lane.b32.xlu0 %v327, 12
      %v621 = vpop.permute.xlu0 %620
      %622 = vrot.lane.b32.xlu0 %v329, 12
      %v623 = vpop.permute.xlu0 %622
      %624 = vrot.lane.b32.xlu0 %v330, 12
      %v625 = vpop.permute.xlu0 %624
      %626 = vrot.lane.b32.xlu0 %v332, 12
      %v627 = vpop.permute.xlu0 %626
      %628 = vrot.lane.b32.xlu0 %v333, 12
      %v629 = vpop.permute.xlu0 %628
      %630 = vrot.lane.b32.xlu0 %v335, 12
      %v631 = vpop.permute.xlu0 %630
      %632 = vrot.lane.b32.xlu0 %v336, 12
      %v633 = vpop.permute.xlu0 %632
      %634 = vrot.lane.b32.xlu0 %v338, 12
      %v635 = vpop.permute.xlu0 %634
      %636 = vrot.lane.b32.xlu0 %v339, 12
      %v637 = vpop.permute.xlu0 %636
      %v659 = vrot.slane %v338, 1
      %v660 = vrot.slane %v339, 1
      %v661 = vsel %vm374, %v659, %v660
      %v662 = vrot.slane %v340, 1
      %v663 = vsel %vm374, %v660, %v662
      %664 = vrot.lane.b32.xlu0 %v382, 16
      %v665 = vpop.permute.xlu0 %664
      %666 = vrot.lane.b32.xlu0 %v384, 16
      %v667 = vpop.permute.xlu0 %666
      %668 = vrot.lane.b32.xlu0 %v387, 16
      %v669 = vpop.permute.xlu0 %668
      %670 = vrot.lane.b32.xlu0 %v389, 16
      %v671 = vpop.permute.xlu0 %670
      %672 = vrot.lane.b32.xlu0 %v392, 16
      %v673 = vpop.permute.xlu0 %672
      %674 = vrot.lane.b32.xlu0 %v394, 16
      %v675 = vpop.permute.xlu0 %674
      %676 = vrot.lane.b32.xlu0 %v397, 16
      %v677 = vpop.permute.xlu0 %676
      %678 = vrot.lane.b32.xlu0 %v399, 16
      %v679 = vpop.permute.xlu0 %678
      %680 = vrot.lane.b32.xlu0 %v402, 16
      %v681 = vpop.permute.xlu0 %680
      %682 = vrot.lane.b32.xlu0 %v404, 16
      %v683 = vpop.permute.xlu0 %682
      %684 = vrot.lane.b32.xlu0 %v407, 16
      %v685 = vpop.permute.xlu0 %684
      %686 = vrot.lane.b32.xlu0 %v409, 16
      %v687 = vpop.permute.xlu0 %686
      %688 = vrot.lane.b32.xlu0 %v412, 16
      %v689 = vpop.permute.xlu0 %688
      %690 = vrot.lane.b32.xlu0 %v414, 16
      %v691 = vpop.permute.xlu0 %690
      %692 = vrot.lane.b32.xlu0 %v417, 16
      %v693 = vpop.permute.xlu0 %692
      %694 = vrot.lane.b32.xlu0 %v419, 16
      %v695 = vpop.permute.xlu0 %694
      %696 = vrot.lane.b32.xlu0 %v422, 16
      %v697 = vpop.permute.xlu0 %696
      %698 = vrot.lane.b32.xlu0 %v424, 16
      %v699 = vpop.permute.xlu0 %698
      %700 = vrot.lane.b32.xlu0 %v661, 16
      %v701 = vpop.permute.xlu0 %700
      %702 = vrot.lane.b32.xlu0 %v663, 16
      %v703 = vpop.permute.xlu0 %702
      %v724 = vrot.slane %v338, 2
      %v725 = vrot.slane %v339, 2
      %v726 = vsel %vm485, %v724, %v725
      %v727 = vrot.slane %v340, 2
      %v728 = vsel %vm485, %v725, %v727
      %729 = vrot.lane.b32.xlu0 %v493, 20
      %v730 = vpop.permute.xlu0 %729
      %731 = vrot.lane.b32.xlu0 %v495, 20
      %v732 = vpop.permute.xlu0 %731
      %733 = vrot.lane.b32.xlu0 %v498, 20
      %v734 = vpop.permute.xlu0 %733
      %735 = vrot.lane.b32.xlu0 %v500, 20
      %v736 = vpop.permute.xlu0 %735
      %737 = vrot.lane.b32.xlu0 %v503, 20
      %v738 = vpop.permute.xlu0 %737
      %739 = vrot.lane.b32.xlu0 %v505, 20
      %v740 = vpop.permute.xlu0 %739
      %741 = vrot.lane.b32.xlu0 %v508, 20
      %v742 = vpop.permute.xlu0 %741
      %743 = vrot.lane.b32.xlu0 %v510, 20
      %v744 = vpop.permute.xlu0 %743
      %745 = vrot.lane.b32.xlu0 %v513, 20
      %v746 = vpop.permute.xlu0 %745
      %747 = vrot.lane.b32.xlu0 %v515, 20
      %v748 = vpop.permute.xlu0 %747
      %749 = vrot.lane.b32.xlu0 %v518, 20
      %v750 = vpop.permute.xlu0 %749
      %751 = vrot.lane.b32.xlu0 %v520, 20
      %v752 = vpop.permute.xlu0 %751
      %753 = vrot.lane.b32.xlu0 %v523, 20
      %v754 = vpop.permute.xlu0 %753
      %755 = vrot.lane.b32.xlu0 %v525, 20
      %v756 = vpop.permute.xlu0 %755
      %757 = vrot.lane.b32.xlu0 %v528, 20
      %v758 = vpop.permute.xlu0 %757
      %759 = vrot.lane.b32.xlu0 %v530, 20
      %v760 = vpop.permute.xlu0 %759
      %761 = vrot.lane.b32.xlu0 %v533, 20
      %v762 = vpop.permute.xlu0 %761
      %763 = vrot.lane.b32.xlu0 %v535, 20
      %v764 = vpop.permute.xlu0 %763
      %765 = vrot.lane.b32.xlu0 %v726, 20
      %v766 = vpop.permute.xlu0 %765
      %767 = vrot.lane.b32.xlu0 %v728, 20
      %v768 = vpop.permute.xlu0 %767
      %791 = vrot.lane.b32.xlu0 %v314, 24
      %v792 = vpop.permute.xlu0 %791
      %793 = vrot.lane.b32.xlu0 %v315, 24
      %v794 = vpop.permute.xlu0 %793
      %795 = vrot.lane.b32.xlu0 %v317, 24
      %v796 = vpop.permute.xlu0 %795
      %797 = vrot.lane.b32.xlu0 %v318, 24
      %v798 = vpop.permute.xlu0 %797
      %799 = vrot.lane.b32.xlu0 %v320, 24
      %v800 = vpop.permute.xlu0 %799
      %801 = vrot.lane.b32.xlu0 %v321, 24
      %v802 = vpop.permute.xlu0 %801
      %803 = vrot.lane.b32.xlu0 %v323, 24
      %v804 = vpop.permute.xlu0 %803
      %805 = vrot.lane.b32.xlu0 %v324, 24
      %v806 = vpop.permute.xlu0 %805
      %807 = vrot.lane.b32.xlu0 %v326, 24
      %v808 = vpop.permute.xlu0 %807
      %809 = vrot.lane.b32.xlu0 %v327, 24
      %v810 = vpop.permute.xlu0 %809
      %811 = vrot.lane.b32.xlu0 %v329, 24
      %v812 = vpop.permute.xlu0 %811
      %813 = vrot.lane.b32.xlu0 %v330, 24
      %v814 = vpop.permute.xlu0 %813
      %815 = vrot.lane.b32.xlu0 %v332, 24
      %v816 = vpop.permute.xlu0 %815
      %817 = vrot.lane.b32.xlu0 %v333, 24
      %v818 = vpop.permute.xlu0 %817
      %819 = vrot.lane.b32.xlu0 %v335, 24
      %v820 = vpop.permute.xlu0 %819
      %821 = vrot.lane.b32.xlu0 %v336, 24
      %v822 = vpop.permute.xlu0 %821
      %823 = vrot.lane.b32.xlu0 %v338, 24
      %v824 = vpop.permute.xlu0 %823
      %825 = vrot.lane.b32.xlu0 %v339, 24
      %v826 = vpop.permute.xlu0 %825
      %827 = vrot.lane.b32.xlu0 %v341, 24
      %v828 = vpop.permute.xlu0 %827
      %829 = vrot.lane.b32.xlu0 %v342, 24
      %v830 = vpop.permute.xlu0 %829
      %v852 = vrot.slane %v341, 1
      %v853 = vrot.slane %v342, 1
      %v854 = vsel %vm374, %v852, %v853
      %v855 = vrot.slane %v343, 1
      %v856 = vsel %vm374, %v853, %v855
      %857 = vrot.lane.b32.xlu0 %v387, 28
      %v858 = vpop.permute.xlu0 %857
      %859 = vrot.lane.b32.xlu0 %v389, 28
      %v860 = vpop.permute.xlu0 %859
      %861 = vrot.lane.b32.xlu0 %v392, 28
      %v862 = vpop.permute.xlu0 %861
      %863 = vrot.lane.b32.xlu0 %v394, 28
      %v864 = vpop.permute.xlu0 %863
      %865 = vrot.lane.b32.xlu0 %v397, 28
      %v866 = vpop.permute.xlu0 %865
      %867 = vrot.lane.b32.xlu0 %v399, 28
      %v868 = vpop.permute.xlu0 %867
      %869 = vrot.lane.b32.xlu0 %v402, 28
      %v870 = vpop.permute.xlu0 %869
      %871 = vrot.lane.b32.xlu0 %v404, 28
      %v872 = vpop.permute.xlu0 %871
      %873 = vrot.lane.b32.xlu0 %v407, 28
      %v874 = vpop.permute.xlu0 %873
      %875 = vrot.lane.b32.xlu0 %v409, 28
      %v876 = vpop.permute.xlu0 %875
      %877 = vrot.lane.b32.xlu0 %v412, 28
      %v878 = vpop.permute.xlu0 %877
      %879 = vrot.lane.b32.xlu0 %v414, 28
      %v880 = vpop.permute.xlu0 %879
      %881 = vrot.lane.b32.xlu0 %v417, 28
      %v882 = vpop.permute.xlu0 %881
      %883 = vrot.lane.b32.xlu0 %v419, 28
      %v884 = vpop.permute.xlu0 %883
      %885 = vrot.lane.b32.xlu0 %v422, 28
      %v886 = vpop.permute.xlu0 %885
      %887 = vrot.lane.b32.xlu0 %v424, 28
      %v888 = vpop.permute.xlu0 %887
      %889 = vrot.lane.b32.xlu0 %v661, 28
      %v890 = vpop.permute.xlu0 %889
      %891 = vrot.lane.b32.xlu0 %v663, 28
      %v892 = vpop.permute.xlu0 %891
      %893 = vrot.lane.b32.xlu0 %v854, 28
      %v894 = vpop.permute.xlu0 %893
      %895 = vrot.lane.b32.xlu0 %v856, 28
      %v896 = vpop.permute.xlu0 %895
      %v917 = vrot.slane %v341, 2
      %v918 = vrot.slane %v342, 2
      %v919 = vsel %vm485, %v917, %v918
      %v920 = vrot.slane %v343, 2
      %v921 = vsel %vm485, %v918, %v920
      %922 = vrot.lane.b32.xlu0 %v498, 32
      %v923 = vpop.permute.xlu0 %922
      %924 = vrot.lane.b32.xlu0 %v500, 32
      %v925 = vpop.permute.xlu0 %924
      %926 = vrot.lane.b32.xlu0 %v503, 32
      %v927 = vpop.permute.xlu0 %926
      %928 = vrot.lane.b32.xlu0 %v505, 32
      %v929 = vpop.permute.xlu0 %928
      %930 = vrot.lane.b32.xlu0 %v508, 32
      %v931 = vpop.permute.xlu0 %930
      %932 = vrot.lane.b32.xlu0 %v510, 32
      %v933 = vpop.permute.xlu0 %932
      %934 = vrot.lane.b32.xlu0 %v513, 32
      %v935 = vpop.permute.xlu0 %934
      %936 = vrot.lane.b32.xlu0 %v515, 32
      %v937 = vpop.permute.xlu0 %936
      %938 = vrot.lane.b32.xlu0 %v518, 32
      %v939 = vpop.permute.xlu0 %938
      %940 = vrot.lane.b32.xlu0 %v520, 32
      %v941 = vpop.permute.xlu0 %940
      %942 = vrot.lane.b32.xlu0 %v523, 32
      %v943 = vpop.permute.xlu0 %942
      %944 = vrot.lane.b32.xlu0 %v525, 32
      %v945 = vpop.permute.xlu0 %944
      %946 = vrot.lane.b32.xlu0 %v528, 32
      %v947 = vpop.permute.xlu0 %946
      %948 = vrot.lane.b32.xlu0 %v530, 32
      %v949 = vpop.permute.xlu0 %948
      %950 = vrot.lane.b32.xlu0 %v533, 32
      %v951 = vpop.permute.xlu0 %950
      %952 = vrot.lane.b32.xlu0 %v535, 32
      %v953 = vpop.permute.xlu0 %952
      %954 = vrot.lane.b32.xlu0 %v726, 32
      %v955 = vpop.permute.xlu0 %954
      %956 = vrot.lane.b32.xlu0 %v728, 32
      %v957 = vpop.permute.xlu0 %956
      %958 = vrot.lane.b32.xlu0 %v919, 32
      %v959 = vpop.permute.xlu0 %958
      %960 = vrot.lane.b32.xlu0 %v921, 32
      %v961 = vpop.permute.xlu0 %960
      %vm982 = vcmask 31744
      %v983 = vsel %vm982, %v308, %v426
      %v984 = vsel %vm982, %v309, %v428
      %v985 = vsel %vm982, %v311, %v430
      %v986 = vsel %vm982, %v312, %v432
      %v987 = vsel %vm982, %v314, %v434
      %v988 = vsel %vm982, %v315, %v436
      %v989 = vsel %vm982, %v317, %v438
      %v990 = vsel %vm982, %v318, %v440
      %v991 = vsel %vm982, %v320, %v442
      %v992 = vsel %vm982, %v321, %v444
      %v993 = vsel %vm982, %v323, %v446
      %v994 = vsel %vm982, %v324, %v448
      %v995 = vsel %vm982, %v326, %v450
      %v996 = vsel %vm982, %v327, %v452
      %v997 = vsel %vm982, %v329, %v454
      %v998 = vsel %vm982, %v330, %v456
      %v999 = vsel %vm982, %v332, %v458
      %v1000 = vsel %vm982, %v333, %v460
      %v1001 = vsel %vm982, %v335, %v462
      %v1002 = vsel %vm982, %v336, %v464
      %vm1003 = vcmask 64512
      %v1004 = vsel %vm1003, %v983, %v537
      %v1005 = vsel %vm1003, %v984, %v539
      %v1006 = vsel %vm1003, %v985, %v541
      %v1007 = vsel %vm1003, %v986, %v543
      %v1008 = vsel %vm1003, %v987, %v545
      %v1009 = vsel %vm1003, %v988, %v547
      %v1010 = vsel %vm1003, %v989, %v549
      %v1011 = vsel %vm1003, %v990, %v551
      %v1012 = vsel %vm1003, %v991, %v553
      %v1013 = vsel %vm1003, %v992, %v555
      %v1014 = vsel %vm1003, %v993, %v557
      %v1015 = vsel %vm1003, %v994, %v559
      %v1016 = vsel %vm1003, %v995, %v561
      %v1017 = vsel %vm1003, %v996, %v563
      %v1018 = vsel %vm1003, %v997, %v565
      %v1019 = vsel %vm1003, %v998, %v567
      %v1020 = vsel %vm1003, %v999, %v569
      %v1021 = vsel %vm1003, %v1000, %v571
      %v1022 = vsel %vm1003, %v1001, %v573
      %v1023 = vsel %vm1003, %v1002, %v575
      %vm1024 = vcmask 97280
      %v1025 = vsel %vm1024, %v1004, %v599
      %v1026 = vsel %vm1024, %v1005, %v601
      %v1027 = vsel %vm1024, %v1006, %v603
      %v1028 = vsel %vm1024, %v1007, %v605
      %v1029 = vsel %vm1024, %v1008, %v607
      %v1030 = vsel %vm1024, %v1009, %v609
      %v1031 = vsel %vm1024, %v1010, %v611
      %v1032 = vsel %vm1024, %v1011, %v613
      %v1033 = vsel %vm1024, %v1012, %v615
      %v1034 = vsel %vm1024, %v1013, %v617
      %v1035 = vsel %vm1024, %v1014, %v619
      %v1036 = vsel %vm1024, %v1015, %v621
      %v1037 = vsel %vm1024, %v1016, %v623
      %v1038 = vsel %vm1024, %v1017, %v625
      %v1039 = vsel %vm1024, %v1018, %v627
      %v1040 = vsel %vm1024, %v1019, %v629
      %v1041 = vsel %vm1024, %v1020, %v631
      %v1042 = vsel %vm1024, %v1021, %v633
      %v1043 = vsel %vm1024, %v1022, %v635
      %v1044 = vsel %vm1024, %v1023, %v637
      %vm1045 = vcmask 130048
      %v1046 = vsel %vm1045, %v1025, %v665
      %v1047 = vsel %vm1045, %v1026, %v667
      %v1048 = vsel %vm1045, %v1027, %v669
      %v1049 = vsel %vm1045, %v1028, %v671
      %v1050 = vsel %vm1045, %v1029, %v673
      %v1051 = vsel %vm1045, %v1030, %v675
      %v1052 = vsel %vm1045, %v1031, %v677
      %v1053 = vsel %vm1045, %v1032, %v679
      %v1054 = vsel %vm1045, %v1033, %v681
      %v1055 = vsel %vm1045, %v1034, %v683
      %v1056 = vsel %vm1045, %v1035, %v685
      %v1057 = vsel %vm1045, %v1036, %v687
      %v1058 = vsel %vm1045, %v1037, %v689
      %v1059 = vsel %vm1045, %v1038, %v691
      %v1060 = vsel %vm1045, %v1039, %v693
      %v1061 = vsel %vm1045, %v1040, %v695
      %v1062 = vsel %vm1045, %v1041, %v697
      %v1063 = vsel %vm1045, %v1042, %v699
      %v1064 = vsel %vm1045, %v1043, %v701
      %v1065 = vsel %vm1045, %v1044, %v703
      %vm1066 = vcmask 162816
      %v1067 = vsel %vm1066, %v1046, %v730
      %v1068 = vsel %vm1066, %v1047, %v732
      %v1069 = vsel %vm1066, %v1048, %v734
      %v1070 = vsel %vm1066, %v1049, %v736
      %v1071 = vsel %vm1066, %v1050, %v738
      %v1072 = vsel %vm1066, %v1051, %v740
      %v1073 = vsel %vm1066, %v1052, %v742
      %v1074 = vsel %vm1066, %v1053, %v744
      %v1075 = vsel %vm1066, %v1054, %v746
      %v1076 = vsel %vm1066, %v1055, %v748
      %v1077 = vsel %vm1066, %v1056, %v750
      %v1078 = vsel %vm1066, %v1057, %v752
      %v1079 = vsel %vm1066, %v1058, %v754
      %v1080 = vsel %vm1066, %v1059, %v756
      %v1081 = vsel %vm1066, %v1060, %v758
      %v1082 = vsel %vm1066, %v1061, %v760
      %v1083 = vsel %vm1066, %v1062, %v762
      %v1084 = vsel %vm1066, %v1063, %v764
      %v1085 = vsel %vm1066, %v1064, %v766
      %v1086 = vsel %vm1066, %v1065, %v768
      %vm1087 = vcmask 195584
      %v1088 = vsel %vm1087, %v1067, %v792
      %v1089 = vsel %vm1087, %v1068, %v794
      %v1090 = vsel %vm1087, %v1069, %v796
      %v1091 = vsel %vm1087, %v1070, %v798
      %v1092 = vsel %vm1087, %v1071, %v800
      %v1093 = vsel %vm1087, %v1072, %v802
      %v1094 = vsel %vm1087, %v1073, %v804
      %v1095 = vsel %vm1087, %v1074, %v806
      %v1096 = vsel %vm1087, %v1075, %v808
      %v1097 = vsel %vm1087, %v1076, %v810
      %v1098 = vsel %vm1087, %v1077, %v812
      %v1099 = vsel %vm1087, %v1078, %v814
      %v1100 = vsel %vm1087, %v1079, %v816
      %v1101 = vsel %vm1087, %v1080, %v818
      %v1102 = vsel %vm1087, %v1081, %v820
      %v1103 = vsel %vm1087, %v1082, %v822
      %v1104 = vsel %vm1087, %v1083, %v824
      %v1105 = vsel %vm1087, %v1084, %v826
      %v1106 = vsel %vm1087, %v1085, %v828
      %v1107 = vsel %vm1087, %v1086, %v830
      %vm1108 = vcmask 228352
      %v1109 = vsel %vm1108, %v1088, %v858
      %v1110 = vsel %vm1108, %v1089, %v860
      %v1111 = vsel %vm1108, %v1090, %v862
      %v1112 = vsel %vm1108, %v1091, %v864
      %v1113 = vsel %vm1108, %v1092, %v866
      %v1114 = vsel %vm1108, %v1093, %v868
      %v1115 = vsel %vm1108, %v1094, %v870
      %v1116 = vsel %vm1108, %v1095, %v872
      %v1117 = vsel %vm1108, %v1096, %v874
      %v1118 = vsel %vm1108, %v1097, %v876
      %v1119 = vsel %vm1108, %v1098, %v878
      %v1120 = vsel %vm1108, %v1099, %v880
      %v1121 = vsel %vm1108, %v1100, %v882
      %v1122 = vsel %vm1108, %v1101, %v884
      %v1123 = vsel %vm1108, %v1102, %v886
      %v1124 = vsel %vm1108, %v1103, %v888
      %v1125 = vsel %vm1108, %v1104, %v890
      %v1126 = vsel %vm1108, %v1105, %v892
      %v1127 = vsel %vm1108, %v1106, %v894
      %v1128 = vsel %vm1108, %v1107, %v896
      %vm1129 = vcmask 261120
      %v1130 = vsel %vm1129, %v1109, %v923
      %v1131 = vsel %vm1129, %v1110, %v925
      %v1132 = vsel %vm1129, %v1111, %v927
      %v1133 = vsel %vm1129, %v1112, %v929
      %v1134 = vsel %vm1129, %v1113, %v931
      %v1135 = vsel %vm1129, %v1114, %v933
      %v1136 = vsel %vm1129, %v1115, %v935
      %v1137 = vsel %vm1129, %v1116, %v937
      %v1138 = vsel %vm1129, %v1117, %v939
      %v1139 = vsel %vm1129, %v1118, %v941
      %v1140 = vsel %vm1129, %v1119, %v943
      %v1141 = vsel %vm1129, %v1120, %v945
      %v1142 = vsel %vm1129, %v1121, %v947
      %v1143 = vsel %vm1129, %v1122, %v949
      %v1144 = vsel %vm1129, %v1123, %v951
      %v1145 = vsel %vm1129, %v1124, %v953
      %v1146 = vsel %vm1129, %v1125, %v955
      %v1147 = vsel %vm1129, %v1126, %v957
      %v1148 = vsel %vm1129, %v1127, %v959
      %v1149 = vsel %vm1129, %v1128, %v961
      %v1150 = vpack.c.bf16 %v1131, %v1130
      %v1151 = vpack.c.bf16 %v1133, %v1132
      %v1152 = vpack.c.bf16 %v1135, %v1134
      %v1153 = vpack.c.bf16 %v1137, %v1136
      %v1154 = vpack.c.bf16 %v1139, %v1138
      %v1155 = vpack.c.bf16 %v1141, %v1140
      %v1156 = vpack.c.bf16 %v1143, %v1142
      %v1157 = vpack.c.bf16 %v1145, %v1144
      %v1158 = vpack.c.bf16 %v1147, %v1146
      %v1159 = vpack.c.bf16 %v1149, %v1148
      %v1160 = vld [vmem:[%s1] sm:$0xf]
      %v1161 = vld [vmem:[%s1 + $0x4] sm:$0xf]
      %v1162 = vld [vmem:[%s1 + $0x8] sm:$0xf]
      %v1163 = vld [vmem:[%s1 + $0xc] sm:$0xf]
      %v1164 = vld [vmem:[%s1 + $0x10] sm:$0x3]
      %v1170 = vunpack.c.l.b16 %v1160
      %v1171 = vunpack.c.l.b16 %v1161
      %v1172 = vunpack.c.l.b16 %v1162
      %v1173 = vunpack.c.l.b16 %v1163
      %v1174 = vunpack.c.l.b16 %v1164
      %v1175 = vpack.c.b16 %v1171, %v1170
      %v1176 = vpack.c.b16 %v1173, %v1172
      %v1177 = vpack.c.b16 %v1174, %v1174
      %vm1180 = vcmask 293888
      %v1182 = vsel %vm1180, %v1150, 0
      %v1185 = vsel %vm1180, %v1151, 0
      %v1188 = vsel %vm1180, %v1152, 0
      %v1191 = vsel %vm1180, %v1153, 0
      %v1194 = vsel %vm1180, %v1154, 0
      %v1197 = vsel %vm1180, %v1155, 0
      %v1200 = vsel %vm1180, %v1156, 0
      %v1203 = vsel %vm1180, %v1157, 0
      %v1206 = vsel %vm1180, %v1158, 0
      %v1209 = vsel %vm1180, %v1159, 0
      %vm1211 = vcmask 1041408
      %v1213 = vsel %vm1211, %v1177, 0
      %1215 = vmatprep.subr.bf16.mxu0 0
      %1216 = vmatpush1.bf16.msra.mxu0 %v1175
      %1217 = vmatprep.subr.bf16.mxu0 0
      %1218 = vmatpush1.bf16.msra.mxu0 %v1176
      %1219 = vmatprep.subr.bf16.mxu0 0
      %1220 = vmatpush1.bf16.msra.mxu0 %v1213
      %1221 = vmatprep.subr.bf16.mxu0 0
      %1222 = vmatpush1.bf16.msra.mxu0 0
      %1223 = vmatprep.subr.bf16.mxu0 0
      %1224 = vmatpush1.bf16.msra.mxu0 0
      %1225 = vmatprep.subr.bf16.mxu0 0
      %1226 = vmatpush1.bf16.msra.mxu0 0
      %1227 = vmatprep.subr.bf16.mxu0 0
      %1228 = vmatpush1.bf16.msra.mxu0 0
      %1229 = vmatprep.subr.bf16.mxu0 0
      %1230 = vmatpush1.bf16.msra.mxu0 0
      %1231 = vmatprep.subr.bf16.mxu0 0
      %1232 = vmatpush1.bf16.msra.mxu0 0
      %1233 = vmatprep.subr.bf16.mxu0 0
      %1234 = vmatpush1.bf16.msra.mxu0 0
      %1235 = vmatprep.subr.bf16.mxu0 0
      %1236 = vmatpush1.bf16.msra.mxu0 0
      %1237 = vmatprep.subr.bf16.mxu0 0
      %1238 = vmatpush1.bf16.msra.mxu0 0
      %1239 = vmatprep.subr.bf16.mxu0 0
      %1240 = vmatpush1.bf16.msra.mxu0 0
      %1241 = vmatprep.subr.bf16.mxu0 0
      %1242 = vmatpush1.bf16.msra.mxu0 0
      %1243 = vmatprep.subr.bf16.mxu0 0
      %1244 = vmatpush1.bf16.msra.mxu0 0
      %1245 = vmatprep.subr.bf16.mxu0 0
      %1246 = vmatpush1.bf16.msra.mxu0 0
      %1247 = vmatprep.mubr.bf16.mxu0 0
      %1248 = vmatmul.mubr.bf16.gmra.mrb[0].mxu0 %v1182
      %v1249 = vpop.f32.mrb[0].mxu0
      %v1250 = vadd.f32 0.0, %v1249
      %v1251 = vpop.f32.mrb[0].mxu0
      %v1252 = vpop.f32.mrb[0].mxu0
      %v1253 = vadd.f32 0.0, %v1252
      %v1254 = vpop.f32.mrb[0].mxu0
      %1255 = vmatprep.mubr.bf16.mxu0 0
      %1256 = vmatmul.mubr.bf16.gmra.mrb[0].mxu0 %v1185
      %v1257 = vpop.f32.mrb[0].mxu0
      %v1258 = vadd.f32 0.0, %v1257
      %v1259 = vpop.f32.mrb[0].mxu0
      %v1260 = vpop.f32.mrb[0].mxu0
      %v1261 = vadd.f32 0.0, %v1260
      %v1262 = vpop.f32.mrb[0].mxu0
      %1263 = vmatprep.mubr.bf16.mxu0 0
      %1264 = vmatmul.mubr.bf16.gmra.mrb[0].mxu0 %v1188
      %v1265 = vpop.f32.mrb[0].mxu0
      %v1266 = vadd.f32 0.0, %v1265
      %v1267 = vpop.f32.mrb[0].mxu0
      %v1268 = vpop.f32.mrb[0].mxu0
      %v1269 = vadd.f32 0.0, %v1268
      %v1270 = vpop.f32.mrb[0].mxu0
      %1271 = vmatprep.mubr.bf16.mxu0 0
      %1272 = vmatmul.mubr.bf16.gmra.mrb[0].mxu0 %v1191
      %v1273 = vpop.f32.mrb[0].mxu0
      %v1274 = vadd.f32 0.0, %v1273
      %v1275 = vpop.f32.mrb[0].mxu0
      %v1276 = vpop.f32.mrb[0].mxu0
      %v1277 = vadd.f32 0.0, %v1276
      %v1278 = vpop.f32.mrb[0].mxu0
      %1279 = vmatprep.mubr.bf16.mxu0 0
      %1280 = vmatmul.mubr.bf16.gmra.mrb[0].mxu0 %v1194
      %v1281 = vpop.f32.mrb[0].mxu0
      %v1282 = vadd.f32 0.0, %v1281
      %v1283 = vpop.f32.mrb[0].mxu0
      %v1284 = vpop.f32.mrb[0].mxu0
      %v1285 = vadd.f32 0.0, %v1284
      %v1286 = vpop.f32.mrb[0].mxu0
      %1287 = vmatprep.mubr.bf16.mxu0 0
      %1288 = vmatmul.mubr.bf16.gmra.mrb[0].mxu0 %v1197
      %v1289 = vpop.f32.mrb[0].mxu0
      %v1290 = vadd.f32 0.0, %v1289
      %v1291 = vpop.f32.mrb[0].mxu0
      %v1292 = vpop.f32.mrb[0].mxu0
      %v1293 = vadd.f32 0.0, %v1292
      %v1294 = vpop.f32.mrb[0].mxu0
      %1295 = vmatprep.mubr.bf16.mxu0 0
      %1296 = vmatmul.mubr.bf16.gmra.mrb[0].mxu0 %v1200
      %v1297 = vpop.f32.mrb[0].mxu0
      %v1298 = vadd.f32 0.0, %v1297
      %v1299 = vpop.f32.mrb[0].mxu0
      %v1300 = vpop.f32.mrb[0].mxu0
      %v1301 = vadd.f32 0.0, %v1300
      %v1302 = vpop.f32.mrb[0].mxu0
      %1303 = vmatprep.mubr.bf16.mxu0 0
      %1304 = vmatmul.mubr.bf16.gmra.mrb[0].mxu0 %v1203
      %v1305 = vpop.f32.mrb[0].mxu0
      %v1306 = vadd.f32 0.0, %v1305
      %v1307 = vpop.f32.mrb[0].mxu0
      %v1308 = vpop.f32.mrb[0].mxu0
      %v1309 = vadd.f32 0.0, %v1308
      %v1310 = vpop.f32.mrb[0].mxu0
      %1311 = vmatprep.mubr.bf16.mxu0 0
      %1312 = vmatmul.mubr.bf16.gmra.mrb[0].mxu0 %v1206
      %v1313 = vpop.f32.mrb[0].mxu0
      %v1314 = vadd.f32 0.0, %v1313
      %v1315 = vpop.f32.mrb[0].mxu0
      %v1316 = vpop.f32.mrb[0].mxu0
      %v1317 = vadd.f32 0.0, %v1316
      %v1318 = vpop.f32.mrb[0].mxu0
      %1319 = vmatprep.mubr.bf16.mxu0 0
      %1320 = vmatmul.mubr.bf16.gmra.mrb[0].mxu0 %v1209
      %v1321 = vpop.f32.mrb[0].mxu0
      %v1322 = vadd.f32 0.0, %v1321
      %v1323 = vpop.f32.mrb[0].mxu0
      %v1324 = vpop.f32.mrb[0].mxu0
      %v1325 = vadd.f32 0.0, %v1324
      %v1326 = vpop.f32.mrb[0].mxu0
      %1327 = vdwg.mxu0
      %v1328 = vld [vmem:[%s2] sm:$0x1]
      %v1330 = vlaneseq
      %v1331 = vshrl.u32 %v1330, 7
      %v1332 = vsub.s32 0, %v1331
      %v1333 = vrot.slane %v1328, %v1332
      %v1335 = vmul.f32 %v1250, %v1333
      %v1336 = vmul.f32 %v1253, %v1333
      %v1337 = vmul.f32 %v1258, %v1333
      %v1338 = vmul.f32 %v1261, %v1333
      %v1339 = vmul.f32 %v1266, %v1333
      %v1340 = vmul.f32 %v1269, %v1333
      %v1341 = vmul.f32 %v1274, %v1333
      %v1342 = vmul.f32 %v1277, %v1333
      %v1343 = vmul.f32 %v1282, %v1333
      %v1344 = vmul.f32 %v1285, %v1333
      %v1345 = vmul.f32 %v1290, %v1333
      %v1346 = vmul.f32 %v1293, %v1333
      %v1347 = vmul.f32 %v1298, %v1333
      %v1348 = vmul.f32 %v1301, %v1333
      %v1349 = vmul.f32 %v1306, %v1333
      %v1350 = vmul.f32 %v1309, %v1333
      %v1351 = vmul.f32 %v1314, %v1333
      %v1352 = vmul.f32 %v1317, %v1333
      %v1353 = vmul.f32 %v1322, %v1333
      %v1354 = vmul.f32 %v1325, %v1333
      %v1355 = vld [vmem:[%s3] sm:$0x1]
      %v1357 = vlaneseq
      %v1358 = vshrl.u32 %v1357, 7
      %v1359 = vsub.s32 0, %v1358
      %v1360 = vrot.slane %v1355, %v1359
      %v1362 = vadd.f32 %v1335, %v1360
      %v1363 = vadd.f32 %v1336, %v1360
      %v1364 = vadd.f32 %v1337, %v1360
      %v1365 = vadd.f32 %v1338, %v1360
      %v1366 = vadd.f32 %v1339, %v1360
      %v1367 = vadd.f32 %v1340, %v1360
      %v1368 = vadd.f32 %v1341, %v1360
      %v1369 = vadd.f32 %v1342, %v1360
      %v1370 = vadd.f32 %v1343, %v1360
      %v1371 = vadd.f32 %v1344, %v1360
      %v1372 = vadd.f32 %v1345, %v1360
      %v1373 = vadd.f32 %v1346, %v1360
      %v1374 = vadd.f32 %v1347, %v1360
      %v1375 = vadd.f32 %v1348, %v1360
      %v1376 = vadd.f32 %v1349, %v1360
      %v1377 = vadd.f32 %v1350, %v1360
      %v1378 = vadd.f32 %v1351, %v1360
      %v1379 = vadd.f32 %v1352, %v1360
      %v1380 = vadd.f32 %v1353, %v1360
      %v1381 = vadd.f32 %v1354, %v1360
      %v1382 = vmax.f32 %v1362, 0.0
      %v1383 = vmax.f32 %v1363, 0.0
      %v1384 = vmax.f32 %v1364, 0.0
      %v1385 = vmax.f32 %v1365, 0.0
      %v1386 = vmax.f32 %v1366, 0.0
      %v1387 = vmax.f32 %v1367, 0.0
      %v1388 = vmax.f32 %v1368, 0.0
      %v1389 = vmax.f32 %v1369, 0.0
      %v1390 = vmax.f32 %v1370, 0.0
      %v1391 = vmax.f32 %v1371, 0.0
      %v1392 = vmax.f32 %v1372, 0.0
      %v1393 = vmax.f32 %v1373, 0.0
      %v1394 = vmax.f32 %v1374, 0.0
      %v1395 = vmax.f32 %v1375, 0.0
      %v1396 = vmax.f32 %v1376, 0.0
      %v1397 = vmax.f32 %v1377, 0.0
      %v1398 = vmax.f32 %v1378, 0.0
      %v1399 = vmax.f32 %v1379, 0.0
      %v1400 = vmax.f32 %v1380, 0.0
      %v1401 = vmax.f32 %v1381, 0.0
      %s1402 = ssub.s32 %s305, 1
      %v1403 = vstv %s1402
      %v1404 = vadd.s32 %v1403, 1
      %v1405 = vadd.s32 %v1403, 2
      %v1406 = vadd.s32 %v1403, 3
      %v1407 = vadd.s32 %v1403, 4
      %v1408 = vadd.s32 %v1403, 5
      %v1409 = vadd.s32 %v1403, 6
      %v1410 = vadd.s32 %v1403, 7
      %v1411 = vadd.s32 %v1403, 8
      %v1412 = vadd.s32 %v1403, 9
      %vm1413 = vcmp.ge.s32.totalorder %v1403, 0
      %vm1414 = vcmp.ge.s32.totalorder %v1404, 0
      %vm1415 = vcmp.ge.s32.totalorder %v1405, 0
      %vm1416 = vcmp.ge.s32.totalorder %v1406, 0
      %vm1417 = vcmp.ge.s32.totalorder %v1407, 0
      %vm1418 = vcmp.ge.s32.totalorder %v1408, 0
      %vm1419 = vcmp.ge.s32.totalorder %v1409, 0
      %vm1420 = vcmp.ge.s32.totalorder %v1410, 0
      %vm1421 = vcmp.ge.s32.totalorder %v1411, 0
      %vm1422 = vcmp.ge.s32.totalorder %v1412, 0
      %vm1423 = vcmp.lt.s32.totalorder %v1403, 16
      %vm1424 = vcmp.lt.s32.totalorder %v1404, 16
      %vm1425 = vcmp.lt.s32.totalorder %v1405, 16
      %vm1426 = vcmp.lt.s32.totalorder %v1406, 16
      %vm1427 = vcmp.lt.s32.totalorder %v1407, 16
      %vm1428 = vcmp.lt.s32.totalorder %v1408, 16
      %vm1429 = vcmp.lt.s32.totalorder %v1409, 16
      %vm1430 = vcmp.lt.s32.totalorder %v1410, 16
      %vm1431 = vcmp.lt.s32.totalorder %v1411, 16
      %vm1432 = vcmp.lt.s32.totalorder %v1412, 16
      %vm1433 = vmand %vm1413, %vm1423
      %vm1434 = vmand %vm1414, %vm1424
      %vm1435 = vmand %vm1415, %vm1425
      %vm1436 = vmand %vm1416, %vm1426
      %vm1437 = vmand %vm1417, %vm1427
      %vm1438 = vmand %vm1418, %vm1428
      %vm1439 = vmand %vm1419, %vm1429
      %vm1440 = vmand %vm1420, %vm1430
      %vm1441 = vmand %vm1421, %vm1431
      %vm1442 = vmand %vm1422, %vm1432
      %v1443 = vsel %vm1433, %v1382, 0.0
      %v1444 = vsel %vm1433, %v1383, 0.0
      %v1445 = vsel %vm1434, %v1384, 0.0
      %v1446 = vsel %vm1434, %v1385, 0.0
      %v1447 = vsel %vm1435, %v1386, 0.0
      %v1448 = vsel %vm1435, %v1387, 0.0
      %v1449 = vsel %vm1436, %v1388, 0.0
      %v1450 = vsel %vm1436, %v1389, 0.0
      %v1451 = vsel %vm1437, %v1390, 0.0
      %v1452 = vsel %vm1437, %v1391, 0.0
      %v1453 = vsel %vm1438, %v1392, 0.0
      %v1454 = vsel %vm1438, %v1393, 0.0
      %v1455 = vsel %vm1439, %v1394, 0.0
      %v1456 = vsel %vm1439, %v1395, 0.0
      %v1457 = vsel %vm1440, %v1396, 0.0
      %v1458 = vsel %vm1440, %v1397, 0.0
      %v1459 = vsel %vm1441, %v1398, 0.0
      %v1460 = vsel %vm1441, %v1399, 0.0
      %v1461 = vsel %vm1442, %v1400, 0.0
      %v1462 = vsel %vm1442, %v1401, 0.0
      %vm1483 = vcmask 1040384
      %v1484 = vrot.slane %v1443, 7
      %v1485 = vrot.slane %v1444, 7
      %v1486 = vsel %vm1483, %v1484, %v1485
      %v1487 = vrot.slane %v1445, 7
      %v1488 = vrot.slane %v1446, 7
      %v1489 = vsel %vm1483, %v1487, %v1488
      %v1490 = vrot.slane %v1447, 7
      %v1491 = vrot.slane %v1448, 7
      %v1492 = vsel %vm1483, %v1490, %v1491
      %v1493 = vrot.slane %v1449, 7
      %v1494 = vrot.slane %v1450, 7
      %v1495 = vsel %vm1483, %v1493, %v1494
      %v1496 = vrot.slane %v1451, 7
      %v1497 = vrot.slane %v1452, 7
      %v1498 = vsel %vm1483, %v1496, %v1497
      %v1499 = vrot.slane %v1453, 7
      %v1500 = vrot.slane %v1454, 7
      %v1501 = vsel %vm1483, %v1499, %v1500
      %v1502 = vrot.slane %v1455, 7
      %v1503 = vrot.slane %v1456, 7
      %v1504 = vsel %vm1483, %v1502, %v1503
      %v1505 = vrot.slane %v1457, 7
      %v1506 = vrot.slane %v1458, 7
      %v1507 = vsel %vm1483, %v1505, %v1506
      %v1508 = vrot.slane %v1459, 7
      %v1509 = vrot.slane %v1460, 7
      %v1510 = vsel %vm1483, %v1508, %v1509
      %v1511 = vrot.slane %v1461, 7
      %v1512 = vrot.slane %v1462, 7
      %v1513 = vsel %vm1483, %v1511, %v1512
      %v1542 = vsel %vm1483, 0.0, %v1484
      %v1543 = vsel %vm1483, 0.0, %v1487
      %v1544 = vsel %vm1483, 0.0, %v1490
      %v1545 = vsel %vm1483, 0.0, %v1493
      %v1546 = vsel %vm1483, 0.0, %v1496
      %v1547 = vsel %vm1483, 0.0, %v1499
      %v1548 = vsel %vm1483, 0.0, %v1502
      %v1549 = vsel %vm1483, 0.0, %v1505
      %v1550 = vsel %vm1483, 0.0, %v1508
      %v1551 = vsel %vm1483, 0.0, %v1511
      %v1552 = vsel %vm1483, %v1485, 0.0
      %v1553 = vsel %vm1483, %v1488, 0.0
      %v1554 = vsel %vm1483, %v1491, 0.0
      %v1555 = vsel %vm1483, %v1494, 0.0
      %v1556 = vsel %vm1483, %v1497, 0.0
      %v1557 = vsel %vm1483, %v1500, 0.0
      %v1558 = vsel %vm1483, %v1503, 0.0
      %v1559 = vsel %vm1483, %v1506, 0.0
      %v1560 = vsel %vm1483, %v1509, 0.0
      %v1561 = vsel %vm1483, %v1512, 0.0
      %v1578 = vrot.slane %v1542, 1
      %v1579 = vrot.slane %v1486, 1
      %v1580 = vsel %vm374, %v1578, %v1579
      %v1581 = vrot.slane %v1552, 1
      %v1582 = vsel %vm374, %v1579, %v1581
      %v1583 = vrot.slane %v1543, 1
      %v1584 = vrot.slane %v1489, 1
      %v1585 = vsel %vm374, %v1583, %v1584
      %v1586 = vrot.slane %v1553, 1
      %v1587 = vsel %vm374, %v1584, %v1586
      %v1588 = vrot.slane %v1544, 1
      %v1589 = vrot.slane %v1492, 1
      %v1590 = vsel %vm374, %v1588, %v1589
      %v1591 = vrot.slane %v1554, 1
      %v1592 = vsel %vm374, %v1589, %v1591
      %v1593 = vrot.slane %v1545, 1
      %v1594 = vrot.slane %v1495, 1
      %v1595 = vsel %vm374, %v1593, %v1594
      %v1596 = vrot.slane %v1555, 1
      %v1597 = vsel %vm374, %v1594, %v1596
      %v1598 = vrot.slane %v1546, 1
      %v1599 = vrot.slane %v1498, 1
      %v1600 = vsel %vm374, %v1598, %v1599
      %v1601 = vrot.slane %v1556, 1
      %v1602 = vsel %vm374, %v1599, %v1601
      %v1603 = vrot.slane %v1547, 1
      %v1604 = vrot.slane %v1501, 1
      %v1605 = vsel %vm374, %v1603, %v1604
      %v1606 = vrot.slane %v1557, 1
      %v1607 = vsel %vm374, %v1604, %v1606
      %v1608 = vrot.slane %v1548, 1
      %v1609 = vrot.slane %v1504, 1
      %v1610 = vsel %vm374, %v1608, %v1609
      %v1611 = vrot.slane %v1558, 1
      %v1612 = vsel %vm374, %v1609, %v1611
      %v1613 = vrot.slane %v1549, 1
      %v1614 = vrot.slane %v1507, 1
      %v1615 = vsel %vm374, %v1613, %v1614
      %v1616 = vrot.slane %v1559, 1
      %v1617 = vsel %vm374, %v1614, %v1616
      %1618 = vrot.lane.b32.xlu0 %v1580, 4
      %v1619 = vpop.permute.xlu0 %1618
      %1620 = vrot.lane.b32.xlu0 %v1582, 4
      %v1621 = vpop.permute.xlu0 %1620
      %1622 = vrot.lane.b32.xlu0 %v1585, 4
      %v1623 = vpop.permute.xlu0 %1622
      %1624 = vrot.lane.b32.xlu0 %v1587, 4
      %v1625 = vpop.permute.xlu0 %1624
      %1626 = vrot.lane.b32.xlu0 %v1590, 4
      %v1627 = vpop.permute.xlu0 %1626
      %1628 = vrot.lane.b32.xlu0 %v1592, 4
      %v1629 = vpop.permute.xlu0 %1628
      %1630 = vrot.lane.b32.xlu0 %v1595, 4
      %v1631 = vpop.permute.xlu0 %1630
      %1632 = vrot.lane.b32.xlu0 %v1597, 4
      %v1633 = vpop.permute.xlu0 %1632
      %1634 = vrot.lane.b32.xlu0 %v1600, 4
      %v1635 = vpop.permute.xlu0 %1634
      %1636 = vrot.lane.b32.xlu0 %v1602, 4
      %v1637 = vpop.permute.xlu0 %1636
      %1638 = vrot.lane.b32.xlu0 %v1605, 4
      %v1639 = vpop.permute.xlu0 %1638
      %1640 = vrot.lane.b32.xlu0 %v1607, 4
      %v1641 = vpop.permute.xlu0 %1640
      %1642 = vrot.lane.b32.xlu0 %v1610, 4
      %v1643 = vpop.permute.xlu0 %1642
      %1644 = vrot.lane.b32.xlu0 %v1612, 4
      %v1645 = vpop.permute.xlu0 %1644
      %1646 = vrot.lane.b32.xlu0 %v1615, 4
      %v1647 = vpop.permute.xlu0 %1646
      %1648 = vrot.lane.b32.xlu0 %v1617, 4
      %v1649 = vpop.permute.xlu0 %1648
      %v1666 = vrot.slane %v1542, 2
      %v1667 = vrot.slane %v1486, 2
      %v1668 = vsel %vm485, %v1666, %v1667
      %v1669 = vrot.slane %v1552, 2
      %v1670 = vsel %vm485, %v1667, %v1669
      %v1671 = vrot.slane %v1543, 2
      %v1672 = vrot.slane %v1489, 2
      %v1673 = vsel %vm485, %v1671, %v1672
      %v1674 = vrot.slane %v1553, 2
      %v1675 = vsel %vm485, %v1672, %v1674
      %v1676 = vrot.slane %v1544, 2
      %v1677 = vrot.slane %v1492, 2
      %v1678 = vsel %vm485, %v1676, %v1677
      %v1679 = vrot.slane %v1554, 2
      %v1680 = vsel %vm485, %v1677, %v1679
      %v1681 = vrot.slane %v1545, 2
      %v1682 = vrot.slane %v1495, 2
      %v1683 = vsel %vm485, %v1681, %v1682
      %v1684 = vrot.slane %v1555, 2
      %v1685 = vsel %vm485, %v1682, %v1684
      %v1686 = vrot.slane %v1546, 2
      %v1687 = vrot.slane %v1498, 2
      %v1688 = vsel %vm485, %v1686, %v1687
      %v1689 = vrot.slane %v1556, 2
      %v1690 = vsel %vm485, %v1687, %v1689
      %v1691 = vrot.slane %v1547, 2
      %v1692 = vrot.slane %v1501, 2
      %v1693 = vsel %vm485, %v1691, %v1692
      %v1694 = vrot.slane %v1557, 2
      %v1695 = vsel %vm485, %v1692, %v1694
      %v1696 = vrot.slane %v1548, 2
      %v1697 = vrot.slane %v1504, 2
      %v1698 = vsel %vm485, %v1696, %v1697
      %v1699 = vrot.slane %v1558, 2
      %v1700 = vsel %vm485, %v1697, %v1699
      %v1701 = vrot.slane %v1549, 2
      %v1702 = vrot.slane %v1507, 2
      %v1703 = vsel %vm485, %v1701, %v1702
      %v1704 = vrot.slane %v1559, 2
      %v1705 = vsel %vm485, %v1702, %v1704
      %1706 = vrot.lane.b32.xlu0 %v1668, 8
      %v1707 = vpop.permute.xlu0 %1706
      %1708 = vrot.lane.b32.xlu0 %v1670, 8
      %v1709 = vpop.permute.xlu0 %1708
      %1710 = vrot.lane.b32.xlu0 %v1673, 8
      %v1711 = vpop.permute.xlu0 %1710
      %1712 = vrot.lane.b32.xlu0 %v1675, 8
      %v1713 = vpop.permute.xlu0 %1712
      %1714 = vrot.lane.b32.xlu0 %v1678, 8
      %v1715 = vpop.permute.xlu0 %1714
      %1716 = vrot.lane.b32.xlu0 %v1680, 8
      %v1717 = vpop.permute.xlu0 %1716
      %1718 = vrot.lane.b32.xlu0 %v1683, 8
      %v1719 = vpop.permute.xlu0 %1718
      %1720 = vrot.lane.b32.xlu0 %v1685, 8
      %v1721 = vpop.permute.xlu0 %1720
      %1722 = vrot.lane.b32.xlu0 %v1688, 8
      %v1723 = vpop.permute.xlu0 %1722
      %1724 = vrot.lane.b32.xlu0 %v1690, 8
      %v1725 = vpop.permute.xlu0 %1724
      %1726 = vrot.lane.b32.xlu0 %v1693, 8
      %v1727 = vpop.permute.xlu0 %1726
      %1728 = vrot.lane.b32.xlu0 %v1695, 8
      %v1729 = vpop.permute.xlu0 %1728
      %1730 = vrot.lane.b32.xlu0 %v1698, 8
      %v1731 = vpop.permute.xlu0 %1730
      %1732 = vrot.lane.b32.xlu0 %v1700, 8
      %v1733 = vpop.permute.xlu0 %1732
      %1734 = vrot.lane.b32.xlu0 %v1703, 8
      %v1735 = vpop.permute.xlu0 %1734
      %1736 = vrot.lane.b32.xlu0 %v1705, 8
      %v1737 = vpop.permute.xlu0 %1736
      %1755 = vrot.lane.b32.xlu0 %v1543, 12
      %v1756 = vpop.permute.xlu0 %1755
      %1757 = vrot.lane.b32.xlu0 %v1489, 12
      %v1758 = vpop.permute.xlu0 %1757
      %1759 = vrot.lane.b32.xlu0 %v1544, 12
      %v1760 = vpop.permute.xlu0 %1759
      %1761 = vrot.lane.b32.xlu0 %v1492, 12
      %v1762 = vpop.permute.xlu0 %1761
      %1763 = vrot.lane.b32.xlu0 %v1545, 12
      %v1764 = vpop.permute.xlu0 %1763
      %1765 = vrot.lane.b32.xlu0 %v1495, 12
      %v1766 = vpop.permute.xlu0 %1765
      %1767 = vrot.lane.b32.xlu0 %v1546, 12
      %v1768 = vpop.permute.xlu0 %1767
      %1769 = vrot.lane.b32.xlu0 %v1498, 12
      %v1770 = vpop.permute.xlu0 %1769
      %1771 = vrot.lane.b32.xlu0 %v1547, 12
      %v1772 = vpop.permute.xlu0 %1771
      %1773 = vrot.lane.b32.xlu0 %v1501, 12
      %v1774 = vpop.permute.xlu0 %1773
      %1775 = vrot.lane.b32.xlu0 %v1548, 12
      %v1776 = vpop.permute.xlu0 %1775
      %1777 = vrot.lane.b32.xlu0 %v1504, 12
      %v1778 = vpop.permute.xlu0 %1777
      %1779 = vrot.lane.b32.xlu0 %v1549, 12
      %v1780 = vpop.permute.xlu0 %1779
      %1781 = vrot.lane.b32.xlu0 %v1507, 12
      %v1782 = vpop.permute.xlu0 %1781
      %1783 = vrot.lane.b32.xlu0 %v1550, 12
      %v1784 = vpop.permute.xlu0 %1783
      %1785 = vrot.lane.b32.xlu0 %v1510, 12
      %v1786 = vpop.permute.xlu0 %1785
      %v1804 = vrot.slane %v1550, 1
      %v1805 = vrot.slane %v1510, 1
      %v1806 = vsel %vm374, %v1804, %v1805
      %v1807 = vrot.slane %v1560, 1
      %v1808 = vsel %vm374, %v1805, %v1807
      %1809 = vrot.lane.b32.xlu0 %v1585, 16
      %v1810 = vpop.permute.xlu0 %1809
      %1811 = vrot.lane.b32.xlu0 %v1587, 16
      %v1812 = vpop.permute.xlu0 %1811
      %1813 = vrot.lane.b32.xlu0 %v1590, 16
      %v1814 = vpop.permute.xlu0 %1813
      %1815 = vrot.lane.b32.xlu0 %v1592, 16
      %v1816 = vpop.permute.xlu0 %1815
      %1817 = vrot.lane.b32.xlu0 %v1595, 16
      %v1818 = vpop.permute.xlu0 %1817
      %1819 = vrot.lane.b32.xlu0 %v1597, 16
      %v1820 = vpop.permute.xlu0 %1819
      %1821 = vrot.lane.b32.xlu0 %v1600, 16
      %v1822 = vpop.permute.xlu0 %1821
      %1823 = vrot.lane.b32.xlu0 %v1602, 16
      %v1824 = vpop.permute.xlu0 %1823
      %1825 = vrot.lane.b32.xlu0 %v1605, 16
      %v1826 = vpop.permute.xlu0 %1825
      %1827 = vrot.lane.b32.xlu0 %v1607, 16
      %v1828 = vpop.permute.xlu0 %1827
      %1829 = vrot.lane.b32.xlu0 %v1610, 16
      %v1830 = vpop.permute.xlu0 %1829
      %1831 = vrot.lane.b32.xlu0 %v1612, 16
      %v1832 = vpop.permute.xlu0 %1831
      %1833 = vrot.lane.b32.xlu0 %v1615, 16
      %v1834 = vpop.permute.xlu0 %1833
      %1835 = vrot.lane.b32.xlu0 %v1617, 16
      %v1836 = vpop.permute.xlu0 %1835
      %1837 = vrot.lane.b32.xlu0 %v1806, 16
      %v1838 = vpop.permute.xlu0 %1837
      %1839 = vrot.lane.b32.xlu0 %v1808, 16
      %v1840 = vpop.permute.xlu0 %1839
      %v1857 = vrot.slane %v1550, 2
      %v1858 = vrot.slane %v1510, 2
      %v1859 = vsel %vm485, %v1857, %v1858
      %v1860 = vrot.slane %v1560, 2
      %v1861 = vsel %vm485, %v1858, %v1860
      %1862 = vrot.lane.b32.xlu0 %v1673, 20
      %v1863 = vpop.permute.xlu0 %1862
      %1864 = vrot.lane.b32.xlu0 %v1675, 20
      %v1865 = vpop.permute.xlu0 %1864
      %1866 = vrot.lane.b32.xlu0 %v1678, 20
      %v1867 = vpop.permute.xlu0 %1866
      %1868 = vrot.lane.b32.xlu0 %v1680, 20
      %v1869 = vpop.permute.xlu0 %1868
      %1870 = vrot.lane.b32.xlu0 %v1683, 20
      %v1871 = vpop.permute.xlu0 %1870
      %1872 = vrot.lane.b32.xlu0 %v1685, 20
      %v1873 = vpop.permute.xlu0 %1872
      %1874 = vrot.lane.b32.xlu0 %v1688, 20
      %v1875 = vpop.permute.xlu0 %1874
      %1876 = vrot.lane.b32.xlu0 %v1690, 20
      %v1877 = vpop.permute.xlu0 %1876
      %1878 = vrot.lane.b32.xlu0 %v1693, 20
      %v1879 = vpop.permute.xlu0 %1878
      %1880 = vrot.lane.b32.xlu0 %v1695, 20
      %v1881 = vpop.permute.xlu0 %1880
      %1882 = vrot.lane.b32.xlu0 %v1698, 20
      %v1883 = vpop.permute.xlu0 %1882
      %1884 = vrot.lane.b32.xlu0 %v1700, 20
      %v1885 = vpop.permute.xlu0 %1884
      %1886 = vrot.lane.b32.xlu0 %v1703, 20
      %v1887 = vpop.permute.xlu0 %1886
      %1888 = vrot.lane.b32.xlu0 %v1705, 20
      %v1889 = vpop.permute.xlu0 %1888
      %1890 = vrot.lane.b32.xlu0 %v1859, 20
      %v1891 = vpop.permute.xlu0 %1890
      %1892 = vrot.lane.b32.xlu0 %v1861, 20
      %v1893 = vpop.permute.xlu0 %1892
      %1911 = vrot.lane.b32.xlu0 %v1544, 24
      %v1912 = vpop.permute.xlu0 %1911
      %1913 = vrot.lane.b32.xlu0 %v1492, 24
      %v1914 = vpop.permute.xlu0 %1913
      %1915 = vrot.lane.b32.xlu0 %v1545, 24
      %v1916 = vpop.permute.xlu0 %1915
      %1917 = vrot.lane.b32.xlu0 %v1495, 24
      %v1918 = vpop.permute.xlu0 %1917
      %1919 = vrot.lane.b32.xlu0 %v1546, 24
      %v1920 = vpop.permute.xlu0 %1919
      %1921 = vrot.lane.b32.xlu0 %v1498, 24
      %v1922 = vpop.permute.xlu0 %1921
      %1923 = vrot.lane.b32.xlu0 %v1547, 24
      %v1924 = vpop.permute.xlu0 %1923
      %1925 = vrot.lane.b32.xlu0 %v1501, 24
      %v1926 = vpop.permute.xlu0 %1925
      %1927 = vrot.lane.b32.xlu0 %v1548, 24
      %v1928 = vpop.permute.xlu0 %1927
      %1929 = vrot.lane.b32.xlu0 %v1504, 24
      %v1930 = vpop.permute.xlu0 %1929
      %1931 = vrot.lane.b32.xlu0 %v1549, 24
      %v1932 = vpop.permute.xlu0 %1931
      %1933 = vrot.lane.b32.xlu0 %v1507, 24
      %v1934 = vpop.permute.xlu0 %1933
      %1935 = vrot.lane.b32.xlu0 %v1550, 24
      %v1936 = vpop.permute.xlu0 %1935
      %1937 = vrot.lane.b32.xlu0 %v1510, 24
      %v1938 = vpop.permute.xlu0 %1937
      %1939 = vrot.lane.b32.xlu0 %v1551, 24
      %v1940 = vpop.permute.xlu0 %1939
      %1941 = vrot.lane.b32.xlu0 %v1513, 24
      %v1942 = vpop.permute.xlu0 %1941
      %v1960 = vrot.slane %v1551, 1
      %v1961 = vrot.slane %v1513, 1
      %v1962 = vsel %vm374, %v1960, %v1961
      %v1963 = vrot.slane %v1561, 1
      %v1964 = vsel %vm374, %v1961, %v1963
      %1965 = vrot.lane.b32.xlu0 %v1590, 28
      %v1966 = vpop.permute.xlu0 %1965
      %1967 = vrot.lane.b32.xlu0 %v1592, 28
      %v1968 = vpop.permute.xlu0 %1967
      %1969 = vrot.lane.b32.xlu0 %v1595, 28
      %v1970 = vpop.permute.xlu0 %1969
      %1971 = vrot.lane.b32.xlu0 %v1597, 28
      %v1972 = vpop.permute.xlu0 %1971
      %1973 = vrot.lane.b32.xlu0 %v1600, 28
      %v1974 = vpop.permute.xlu0 %1973
      %1975 = vrot.lane.b32.xlu0 %v1602, 28
      %v1976 = vpop.permute.xlu0 %1975
      %1977 = vrot.lane.b32.xlu0 %v1605, 28
      %v1978 = vpop.permute.xlu0 %1977
      %1979 = vrot.lane.b32.xlu0 %v1607, 28
      %v1980 = vpop.permute.xlu0 %1979
      %1981 = vrot.lane.b32.xlu0 %v1610, 28
      %v1982 = vpop.permute.xlu0 %1981
      %1983 = vrot.lane.b32.xlu0 %v1612, 28
      %v1984 = vpop.permute.xlu0 %1983
      %1985 = vrot.lane.b32.xlu0 %v1615, 28
      %v1986 = vpop.permute.xlu0 %1985
      %1987 = vrot.lane.b32.xlu0 %v1617, 28
      %v1988 = vpop.permute.xlu0 %1987
      %1989 = vrot.lane.b32.xlu0 %v1806, 28
      %v1990 = vpop.permute.xlu0 %1989
      %1991 = vrot.lane.b32.xlu0 %v1808, 28
      %v1992 = vpop.permute.xlu0 %1991
      %1993 = vrot.lane.b32.xlu0 %v1962, 28
      %v1994 = vpop.permute.xlu0 %1993
      %1995 = vrot.lane.b32.xlu0 %v1964, 28
      %v1996 = vpop.permute.xlu0 %1995
      %v2013 = vrot.slane %v1551, 2
      %v2014 = vrot.slane %v1513, 2
      %v2015 = vsel %vm485, %v2013, %v2014
      %v2016 = vrot.slane %v1561, 2
      %v2017 = vsel %vm485, %v2014, %v2016
      %2018 = vrot.lane.b32.xlu0 %v1678, 32
      %v2019 = vpop.permute.xlu0 %2018
      %2020 = vrot.lane.b32.xlu0 %v1680, 32
      %v2021 = vpop.permute.xlu0 %2020
      %2022 = vrot.lane.b32.xlu0 %v1683, 32
      %v2023 = vpop.permute.xlu0 %2022
      %2024 = vrot.lane.b32.xlu0 %v1685, 32
      %v2025 = vpop.permute.xlu0 %2024
      %2026 = vrot.lane.b32.xlu0 %v1688, 32
      %v2027 = vpop.permute.xlu0 %2026
      %2028 = vrot.lane.b32.xlu0 %v1690, 32
      %v2029 = vpop.permute.xlu0 %2028
      %2030 = vrot.lane.b32.xlu0 %v1693, 32
      %v2031 = vpop.permute.xlu0 %2030
      %2032 = vrot.lane.b32.xlu0 %v1695, 32
      %v2033 = vpop.permute.xlu0 %2032
      %2034 = vrot.lane.b32.xlu0 %v1698, 32
      %v2035 = vpop.permute.xlu0 %2034
      %2036 = vrot.lane.b32.xlu0 %v1700, 32
      %v2037 = vpop.permute.xlu0 %2036
      %2038 = vrot.lane.b32.xlu0 %v1703, 32
      %v2039 = vpop.permute.xlu0 %2038
      %2040 = vrot.lane.b32.xlu0 %v1705, 32
      %v2041 = vpop.permute.xlu0 %2040
      %2042 = vrot.lane.b32.xlu0 %v1859, 32
      %v2043 = vpop.permute.xlu0 %2042
      %2044 = vrot.lane.b32.xlu0 %v1861, 32
      %v2045 = vpop.permute.xlu0 %2044
      %2046 = vrot.lane.b32.xlu0 %v2015, 32
      %v2047 = vpop.permute.xlu0 %2046
      %2048 = vrot.lane.b32.xlu0 %v2017, 32
      %v2049 = vpop.permute.xlu0 %2048
      %v2066 = vsel %vm982, %v1542, %v1619
      %v2067 = vsel %vm982, %v1486, %v1621
      %v2068 = vsel %vm982, %v1543, %v1623
      %v2069 = vsel %vm982, %v1489, %v1625
      %v2070 = vsel %vm982, %v1544, %v1627
      %v2071 = vsel %vm982, %v1492, %v1629
      %v2072 = vsel %vm982, %v1545, %v1631
      %v2073 = vsel %vm982, %v1495, %v1633
      %v2074 = vsel %vm982, %v1546, %v1635
      %v2075 = vsel %vm982, %v1498, %v1637
      %v2076 = vsel %vm982, %v1547, %v1639
      %v2077 = vsel %vm982, %v1501, %v1641
      %v2078 = vsel %vm982, %v1548, %v1643
      %v2079 = vsel %vm982, %v1504, %v1645
      %v2080 = vsel %vm982, %v1549, %v1647
      %v2081 = vsel %vm982, %v1507, %v1649
      %v2082 = vsel %vm1003, %v2066, %v1707
      %v2083 = vsel %vm1003, %v2067, %v1709
      %v2084 = vsel %vm1003, %v2068, %v1711
      %v2085 = vsel %vm1003, %v2069, %v1713
      %v2086 = vsel %vm1003, %v2070, %v1715
      %v2087 = vsel %vm1003, %v2071, %v1717
      %v2088 = vsel %vm1003, %v2072, %v1719
      %v2089 = vsel %vm1003, %v2073, %v1721
      %v2090 = vsel %vm1003, %v2074, %v1723
      %v2091 = vsel %vm1003, %v2075, %v1725
      %v2092 = vsel %vm1003, %v2076, %v1727
      %v2093 = vsel %vm1003, %v2077, %v1729
      %v2094 = vsel %vm1003, %v2078, %v1731
      %v2095 = vsel %vm1003, %v2079, %v1733
      %v2096 = vsel %vm1003, %v2080, %v1735
      %v2097 = vsel %vm1003, %v2081, %v1737
      %v2098 = vsel %vm1024, %v2082, %v1756
      %v2099 = vsel %vm1024, %v2083, %v1758
      %v2100 = vsel %vm1024, %v2084, %v1760
      %v2101 = vsel %vm1024, %v2085, %v1762
      %v2102 = vsel %vm1024, %v2086, %v1764
      %v2103 = vsel %vm1024, %v2087, %v1766
      %v2104 = vsel %vm1024, %v2088, %v1768
      %v2105 = vsel %vm1024, %v2089, %v1770
      %v2106 = vsel %vm1024, %v2090, %v1772
      %v2107 = vsel %vm1024, %v2091, %v1774
      %v2108 = vsel %vm1024, %v2092, %v1776
      %v2109 = vsel %vm1024, %v2093, %v1778
      %v2110 = vsel %vm1024, %v2094, %v1780
      %v2111 = vsel %vm1024, %v2095, %v1782
      %v2112 = vsel %vm1024, %v2096, %v1784
      %v2113 = vsel %vm1024, %v2097, %v1786
      %v2114 = vsel %vm1045, %v2098, %v1810
      %v2115 = vsel %vm1045, %v2099, %v1812
      %v2116 = vsel %vm1045, %v2100, %v1814
      %v2117 = vsel %vm1045, %v2101, %v1816
      %v2118 = vsel %vm1045, %v2102, %v1818
      %v2119 = vsel %vm1045, %v2103, %v1820
      %v2120 = vsel %vm1045, %v2104, %v1822
      %v2121 = vsel %vm1045, %v2105, %v1824
      %v2122 = vsel %vm1045, %v2106, %v1826
      %v2123 = vsel %vm1045, %v2107, %v1828
      %v2124 = vsel %vm1045, %v2108, %v1830
      %v2125 = vsel %vm1045, %v2109, %v1832
      %v2126 = vsel %vm1045, %v2110, %v1834
      %v2127 = vsel %vm1045, %v2111, %v1836
      %v2128 = vsel %vm1045, %v2112, %v1838
      %v2129 = vsel %vm1045, %v2113, %v1840
      %v2130 = vsel %vm1066, %v2114, %v1863
      %v2131 = vsel %vm1066, %v2115, %v1865
      %v2132 = vsel %vm1066, %v2116, %v1867
      %v2133 = vsel %vm1066, %v2117, %v1869
      %v2134 = vsel %vm1066, %v2118, %v1871
      %v2135 = vsel %vm1066, %v2119, %v1873
      %v2136 = vsel %vm1066, %v2120, %v1875
      %v2137 = vsel %vm1066, %v2121, %v1877
      %v2138 = vsel %vm1066, %v2122, %v1879
      %v2139 = vsel %vm1066, %v2123, %v1881
      %v2140 = vsel %vm1066, %v2124, %v1883
      %v2141 = vsel %vm1066, %v2125, %v1885
      %v2142 = vsel %vm1066, %v2126, %v1887
      %v2143 = vsel %vm1066, %v2127, %v1889
      %v2144 = vsel %vm1066, %v2128, %v1891
      %v2145 = vsel %vm1066, %v2129, %v1893
      %v2146 = vsel %vm1087, %v2130, %v1912
      %v2147 = vsel %vm1087, %v2131, %v1914
      %v2148 = vsel %vm1087, %v2132, %v1916
      %v2149 = vsel %vm1087, %v2133, %v1918
      %v2150 = vsel %vm1087, %v2134, %v1920
      %v2151 = vsel %vm1087, %v2135, %v1922
      %v2152 = vsel %vm1087, %v2136, %v1924
      %v2153 = vsel %vm1087, %v2137, %v1926
      %v2154 = vsel %vm1087, %v2138, %v1928
      %v2155 = vsel %vm1087, %v2139, %v1930
      %v2156 = vsel %vm1087, %v2140, %v1932
      %v2157 = vsel %vm1087, %v2141, %v1934
      %v2158 = vsel %vm1087, %v2142, %v1936
      %v2159 = vsel %vm1087, %v2143, %v1938
      %v2160 = vsel %vm1087, %v2144, %v1940
      %v2161 = vsel %vm1087, %v2145, %v1942
      %v2162 = vsel %vm1108, %v2146, %v1966
      %v2163 = vsel %vm1108, %v2147, %v1968
      %v2164 = vsel %vm1108, %v2148, %v1970
      %v2165 = vsel %vm1108, %v2149, %v1972
      %v2166 = vsel %vm1108, %v2150, %v1974
      %v2167 = vsel %vm1108, %v2151, %v1976
      %v2168 = vsel %vm1108, %v2152, %v1978
      %v2169 = vsel %vm1108, %v2153, %v1980
      %v2170 = vsel %vm1108, %v2154, %v1982
      %v2171 = vsel %vm1108, %v2155, %v1984
      %v2172 = vsel %vm1108, %v2156, %v1986
      %v2173 = vsel %vm1108, %v2157, %v1988
      %v2174 = vsel %vm1108, %v2158, %v1990
      %v2175 = vsel %vm1108, %v2159, %v1992
      %v2176 = vsel %vm1108, %v2160, %v1994
      %v2177 = vsel %vm1108, %v2161, %v1996
      %v2178 = vsel %vm1129, %v2162, %v2019
      %v2179 = vsel %vm1129, %v2163, %v2021
      %v2180 = vsel %vm1129, %v2164, %v2023
      %v2181 = vsel %vm1129, %v2165, %v2025
      %v2182 = vsel %vm1129, %v2166, %v2027
      %v2183 = vsel %vm1129, %v2167, %v2029
      %v2184 = vsel %vm1129, %v2168, %v2031
      %v2185 = vsel %vm1129, %v2169, %v2033
      %v2186 = vsel %vm1129, %v2170, %v2035
      %v2187 = vsel %vm1129, %v2171, %v2037
      %v2188 = vsel %vm1129, %v2172, %v2039
      %v2189 = vsel %vm1129, %v2173, %v2041
      %v2190 = vsel %vm1129, %v2174, %v2043
      %v2191 = vsel %vm1129, %v2175, %v2045
      %v2192 = vsel %vm1129, %v2176, %v2047
      %v2193 = vsel %vm1129, %v2177, %v2049
      %v2194 = vpack.c.bf16 %v2179, %v2178
      %v2195 = vpack.c.bf16 %v2181, %v2180
      %v2196 = vpack.c.bf16 %v2183, %v2182
      %v2197 = vpack.c.bf16 %v2185, %v2184
      %v2198 = vpack.c.bf16 %v2187, %v2186
      %v2199 = vpack.c.bf16 %v2189, %v2188
      %v2200 = vpack.c.bf16 %v2191, %v2190
      %v2201 = vpack.c.bf16 %v2193, %v2192
      %v2202 = vld [vmem:[%s4] sm:$0xf]
      %v2203 = vld [vmem:[%s4 + $0x4] sm:$0xf]
      %v2204 = vld [vmem:[%s4 + $0x8] sm:$0xf]
      %v2205 = vld [vmem:[%s4 + $0xc] sm:$0xf]
      %v2206 = vld [vmem:[%s4 + $0x10] sm:$0x3]
      %v2212 = vunpack.c.l.b16 %v2202
      %v2213 = vunpack.c.l.b16 %v2203
      %v2214 = vunpack.c.l.b16 %v2204
      %v2215 = vunpack.c.l.b16 %v2205
      %v2216 = vunpack.c.l.b16 %v2206
      %v2217 = vpack.c.b16 %v2213, %v2212
      %v2218 = vpack.c.b16 %v2215, %v2214
      %v2219 = vpack.c.b16 %v2216, %v2216
      %v2223 = vsel %vm1180, %v2194, 0
      %v2226 = vsel %vm1180, %v2195, 0
      %v2229 = vsel %vm1180, %v2196, 0
      %v2232 = vsel %vm1180, %v2197, 0
      %v2235 = vsel %vm1180, %v2198, 0
      %v2238 = vsel %vm1180, %v2199, 0
      %v2241 = vsel %vm1180, %v2200, 0
      %v2244 = vsel %vm1180, %v2201, 0
      %v2247 = vsel %vm1211, %v2219, 0
      %2249 = vmatprep.subr.bf16.mxu0 0
      %2250 = vmatpush1.bf16.msra.mxu0 %v2217
      %2251 = vmatprep.subr.bf16.mxu0 0
      %2252 = vmatpush1.bf16.msra.mxu0 %v2218
      %2253 = vmatprep.subr.bf16.mxu0 0
      %2254 = vmatpush1.bf16.msra.mxu0 %v2247
      %2255 = vmatprep.subr.bf16.mxu0 0
      %2256 = vmatpush1.bf16.msra.mxu0 0
      %2257 = vmatprep.subr.bf16.mxu0 0
      %2258 = vmatpush1.bf16.msra.mxu0 0
      %2259 = vmatprep.subr.bf16.mxu0 0
      %2260 = vmatpush1.bf16.msra.mxu0 0
      %2261 = vmatprep.subr.bf16.mxu0 0
      %2262 = vmatpush1.bf16.msra.mxu0 0
      %2263 = vmatprep.subr.bf16.mxu0 0
      %2264 = vmatpush1.bf16.msra.mxu0 0
      %2265 = vmatprep.subr.bf16.mxu0 0
      %2266 = vmatpush1.bf16.msra.mxu0 0
      %2267 = vmatprep.subr.bf16.mxu0 0
      %2268 = vmatpush1.bf16.msra.mxu0 0
      %2269 = vmatprep.subr.bf16.mxu0 0
      %2270 = vmatpush1.bf16.msra.mxu0 0
      %2271 = vmatprep.subr.bf16.mxu0 0
      %2272 = vmatpush1.bf16.msra.mxu0 0
      %2273 = vmatprep.subr.bf16.mxu0 0
      %2274 = vmatpush1.bf16.msra.mxu0 0
      %2275 = vmatprep.subr.bf16.mxu0 0
      %2276 = vmatpush1.bf16.msra.mxu0 0
      %2277 = vmatprep.subr.bf16.mxu0 0
      %2278 = vmatpush1.bf16.msra.mxu0 0
      %2279 = vmatprep.subr.bf16.mxu0 0
      %2280 = vmatpush1.bf16.msra.mxu0 0
      %2281 = vmatprep.mubr.bf16.mxu0 0
      %2282 = vmatmul.mubr.bf16.gmra.mrb[0].mxu0 %v2223
      %v2283 = vpop.f32.mrb[0].mxu0
      %v2284 = vadd.f32 0.0, %v2283
      %v2285 = vpop.f32.mrb[0].mxu0
      %v2286 = vpop.f32.mrb[0].mxu0
      %v2287 = vadd.f32 0.0, %v2286
      %v2288 = vpop.f32.mrb[0].mxu0
      %2289 = vmatprep.mubr.bf16.mxu0 0
      %2290 = vmatmul.mubr.bf16.gmra.mrb[0].mxu0 %v2226
      %v2291 = vpop.f32.mrb[0].mxu0
      %v2292 = vadd.f32 0.0, %v2291
      %v2293 = vpop.f32.mrb[0].mxu0
      %v2294 = vpop.f32.mrb[0].mxu0
      %v2295 = vadd.f32 0.0, %v2294
      %v2296 = vpop.f32.mrb[0].mxu0
      %2297 = vmatprep.mubr.bf16.mxu0 0
      %2298 = vmatmul.mubr.bf16.gmra.mrb[0].mxu0 %v2229
      %v2299 = vpop.f32.mrb[0].mxu0
      %v2300 = vadd.f32 0.0, %v2299
      %v2301 = vpop.f32.mrb[0].mxu0
      %v2302 = vpop.f32.mrb[0].mxu0
      %v2303 = vadd.f32 0.0, %v2302
      %v2304 = vpop.f32.mrb[0].mxu0
      %2305 = vmatprep.mubr.bf16.mxu0 0
      %2306 = vmatmul.mubr.bf16.gmra.mrb[0].mxu0 %v2232
      %v2307 = vpop.f32.mrb[0].mxu0
      %v2308 = vadd.f32 0.0, %v2307
      %v2309 = vpop.f32.mrb[0].mxu0
      %v2310 = vpop.f32.mrb[0].mxu0
      %v2311 = vadd.f32 0.0, %v2310
      %v2312 = vpop.f32.mrb[0].mxu0
      %2313 = vmatprep.mubr.bf16.mxu0 0
      %2314 = vmatmul.mubr.bf16.gmra.mrb[0].mxu0 %v2235
      %v2315 = vpop.f32.mrb[0].mxu0
      %v2316 = vadd.f32 0.0, %v2315
      %v2317 = vpop.f32.mrb[0].mxu0
      %v2318 = vpop.f32.mrb[0].mxu0
      %v2319 = vadd.f32 0.0, %v2318
      %v2320 = vpop.f32.mrb[0].mxu0
      %2321 = vmatprep.mubr.bf16.mxu0 0
      %2322 = vmatmul.mubr.bf16.gmra.mrb[0].mxu0 %v2238
      %v2323 = vpop.f32.mrb[0].mxu0
      %v2324 = vadd.f32 0.0, %v2323
      %v2325 = vpop.f32.mrb[0].mxu0
      %v2326 = vpop.f32.mrb[0].mxu0
      %v2327 = vadd.f32 0.0, %v2326
      %v2328 = vpop.f32.mrb[0].mxu0
      %2329 = vmatprep.mubr.bf16.mxu0 0
      %2330 = vmatmul.mubr.bf16.gmra.mrb[0].mxu0 %v2241
      %v2331 = vpop.f32.mrb[0].mxu0
      %v2332 = vadd.f32 0.0, %v2331
      %v2333 = vpop.f32.mrb[0].mxu0
      %v2334 = vpop.f32.mrb[0].mxu0
      %v2335 = vadd.f32 0.0, %v2334
      %v2336 = vpop.f32.mrb[0].mxu0
      %2337 = vmatprep.mubr.bf16.mxu0 0
      %2338 = vmatmul.mubr.bf16.gmra.mrb[0].mxu0 %v2244
      %v2339 = vpop.f32.mrb[0].mxu0
      %v2340 = vadd.f32 0.0, %v2339
      %v2341 = vpop.f32.mrb[0].mxu0
      %v2342 = vpop.f32.mrb[0].mxu0
      %v2343 = vadd.f32 0.0, %v2342
      %v2344 = vpop.f32.mrb[0].mxu0
      %2345 = vdwg.mxu0
      %v2362 = vld [vmem:[%s5] sm:$0x1]
      %v2364 = vlaneseq
      %v2365 = vshrl.u32 %v2364, 7
      %v2366 = vsub.s32 0, %v2365
      %v2367 = vrot.slane %v2362, %v2366
      %v2369 = vmul.f32 %v2284, %v2367
      %v2370 = vmul.f32 %v2287, %v2367
      %v2371 = vmul.f32 %v2292, %v2367
      %v2372 = vmul.f32 %v2295, %v2367
      %v2373 = vmul.f32 %v2300, %v2367
      %v2374 = vmul.f32 %v2303, %v2367
      %v2375 = vmul.f32 %v2308, %v2367
      %v2376 = vmul.f32 %v2311, %v2367
      %v2377 = vmul.f32 %v2316, %v2367
      %v2378 = vmul.f32 %v2319, %v2367
      %v2379 = vmul.f32 %v2324, %v2367
      %v2380 = vmul.f32 %v2327, %v2367
      %v2381 = vmul.f32 %v2332, %v2367
      %v2382 = vmul.f32 %v2335, %v2367
      %v2383 = vmul.f32 %v2340, %v2367
      %v2384 = vmul.f32 %v2343, %v2367
      %v2385 = vld [vmem:[%s6] sm:$0x1]
      %v2387 = vlaneseq
      %v2388 = vshrl.u32 %v2387, 7
      %v2389 = vsub.s32 0, %v2388
      %v2390 = vrot.slane %v2385, %v2389
      %v2392 = vadd.f32 %v2369, %v2390
      %v2393 = vadd.f32 %v2370, %v2390
      %v2394 = vadd.f32 %v2371, %v2390
      %v2395 = vadd.f32 %v2372, %v2390
      %v2396 = vadd.f32 %v2373, %v2390
      %v2397 = vadd.f32 %v2374, %v2390
      %v2398 = vadd.f32 %v2375, %v2390
      %v2399 = vadd.f32 %v2376, %v2390
      %v2400 = vadd.f32 %v2377, %v2390
      %v2401 = vadd.f32 %v2378, %v2390
      %v2402 = vadd.f32 %v2379, %v2390
      %v2403 = vadd.f32 %v2380, %v2390
      %v2404 = vadd.f32 %v2381, %v2390
      %v2405 = vadd.f32 %v2382, %v2390
      %v2406 = vadd.f32 %v2383, %v2390
      %v2407 = vadd.f32 %v2384, %v2390
      %v2408 = vadd.f32 %v2392, %v387
      %v2409 = vadd.f32 %v2393, %v389
      %v2410 = vadd.f32 %v2394, %v392
      %v2411 = vadd.f32 %v2395, %v394
      %v2412 = vadd.f32 %v2396, %v397
      %v2413 = vadd.f32 %v2397, %v399
      %v2414 = vadd.f32 %v2398, %v402
      %v2415 = vadd.f32 %v2399, %v404
      %v2416 = vadd.f32 %v2400, %v407
      %v2417 = vadd.f32 %v2401, %v409
      %v2418 = vadd.f32 %v2402, %v412
      %v2419 = vadd.f32 %v2403, %v414
      %v2420 = vadd.f32 %v2404, %v417
      %v2421 = vadd.f32 %v2405, %v419
      %v2422 = vadd.f32 %v2406, %v422
      %v2423 = vadd.f32 %v2407, %v424
      %v2424 = vmax.f32 %v2408, 0.0
      %v2425 = vmax.f32 %v2409, 0.0
      %v2426 = vmax.f32 %v2410, 0.0
      %v2427 = vmax.f32 %v2411, 0.0
      %v2428 = vmax.f32 %v2412, 0.0
      %v2429 = vmax.f32 %v2413, 0.0
      %v2430 = vmax.f32 %v2414, 0.0
      %v2431 = vmax.f32 %v2415, 0.0
      %v2432 = vmax.f32 %v2416, 0.0
      %v2433 = vmax.f32 %v2417, 0.0
      %v2434 = vmax.f32 %v2418, 0.0
      %v2435 = vmax.f32 %v2419, 0.0
      %v2436 = vmax.f32 %v2420, 0.0
      %v2437 = vmax.f32 %v2421, 0.0
      %v2438 = vmax.f32 %v2422, 0.0
      %v2439 = vmax.f32 %v2423, 0.0
      %2440 = vst.msk [vmem:[%s302] sm:$0xff] %vm982, %v2424
      %2441 = vst.msk [vmem:[%s302 + $0x8] sm:$0xff] %vm982, %v2425
      %2442 = vst.msk [vmem:[%s302 + $0x10] sm:$0xff] %vm982, %v2426
      %2443 = vst.msk [vmem:[%s302 + $0x18] sm:$0xff] %vm982, %v2427
      %2444 = vst.msk [vmem:[%s302 + $0x20] sm:$0xff] %vm982, %v2428
      %2445 = vst.msk [vmem:[%s302 + $0x28] sm:$0xff] %vm982, %v2429
      %2446 = vst.msk [vmem:[%s302 + $0x30] sm:$0xff] %vm982, %v2430
      %2447 = vst.msk [vmem:[%s302 + $0x38] sm:$0xff] %vm982, %v2431
      %2448 = vst.msk [vmem:[%s302 + $0x40] sm:$0xff] %vm982, %v2432
      %2449 = vst.msk [vmem:[%s302 + $0x48] sm:$0xff] %vm982, %v2433
      %2450 = vst.msk [vmem:[%s302 + $0x50] sm:$0xff] %vm982, %v2434
      %2451 = vst.msk [vmem:[%s302 + $0x58] sm:$0xff] %vm982, %v2435
      %2452 = vst.msk [vmem:[%s302 + $0x60] sm:$0xff] %vm982, %v2436
      %2453 = vst.msk [vmem:[%s302 + $0x68] sm:$0xff] %vm982, %v2437
      %2454 = vst.msk [vmem:[%s302 + $0x70] sm:$0xff] %vm982, %v2438
      %2455 = vst.msk [vmem:[%s302 + $0x78] sm:$0xff] %vm982, %v2439
      %s2456 = smul.u32 8, %s23
      %p2457 = scmp.lt.s32.totalorder %s22, 1
      %s2458 = scalar_select %p2457, %s22, 1
      %p2459 = scmp.lt.s32.totalorder %s2456, 15
      %s2460 = scalar_select %p2459, %s2456, 15
      %s2461 = smul.addr %s2460, 2
      %s2462 = smul.addr %s2458, 32
      %s2463 = sadd.s32 %s2461, %s2462
      %s2464 = smul.addr %s2463, 8
      %s2465 = scalar_lea.vmem %s7, %s2464
      // Predicated region
      $region49: #{basic_block_forward.1} parent=47 // pred_check
        %p2466 = pneg %p202
      $region50: #{basic_block_forward.1} parent=47 // pred_check_branch
        %2468 = sbr.rel (%p2466) target = $region52
      $region51: #{basic_block_forward.1} parent=47 // pred_region
        %s2469 = smul.u32 8, %s23
      $region52: #{basic_block_forward.1} parent=47 // pred_fallthru
        _
    $region48: #{basic_block_forward.1} parent=5 // pred_fallthru
      _
    %p2470 = scmp.le.s32.totalorder 2, %s13
    // Predicated region
    $region53: #{basic_block_forward.1} parent=5 // pred_check
      %p2471 = pneg %p2470
    $region54: #{basic_block_forward.1} parent=5 // pred_check_branch
      %2473 = sbr.rel (%p2471) target = $region56
    $region55: #{basic_block_forward.1} parent=5 // pred_region
      %s2474 = ssub.s32 %s13, 2
      // Predicated region
      $region57: #{basic_block_forward.1} parent=55 // pred_check
        %p2475 = pneg %p208
      $region58: #{basic_block_forward.1} parent=55 // pred_check_branch
        %2477 = sbr.rel (%p2475) target = $region60
      $region59: #{basic_block_forward.1} parent=55 // pred_region
        %s2478 = smul.u32 8, %s25
        %p2479 = scmp.lt.s32.totalorder %s24, 1
        %s2480 = scalar_select %p2479, %s24, 1
        %p2481 = scmp.lt.s32.totalorder %s2478, 15
        %s2482 = scalar_select %p2481, %s2478, 15
        %s2483 = smul.addr %s2482, 2
        %s2484 = smul.addr %s2480, 32
        %s2485 = sadd.s32 %s2483, %s2484
        %s2486 = smul.addr %s2485, 8
        %s2487 = scalar_lea.vmem %s7, %s2486
      $region60: #{basic_block_forward.1} parent=55 // pred_fallthru
        _
    $region56: #{basic_block_forward.1} parent=5 // pred_fallthru
      _
  $region6: #{basic_block_forward.1} parent=0 // loop_footer
    %s17 = sadd.s32 1, %s13
  $region7: #{basic_block_forward.1} parent=0 // loop_footer_branch
    %12 = sbr.rel target = $region3
  $region8: #{basic_block_forward.1} parent=0 // loop_exit
    _

</llo_original>
